<compile_context>
chip_gen: v7x
topology: tpu7x:2x2x1
jax: 0.10.0
libtpu: 0.0.40
codegen_flags: <defaults>
</compile_context>

<pallas_src>
import math

import jax
import jax.numpy as jnp
from jax import lax
from jax.experimental import pallas as pl
from jax.experimental.pallas import tpu as pltpu

# ---- synthetic model config (stands in for model.config) -------------------
VOCAB = 64
D = 32            # config.n_embd / hidden_size
N_HEADS = 4
HEAD_DIM = D // N_HEADS
F = 64            # MLP intermediate size (2F = 128 -> lane-dense merged gate/up)
N_LAYERS = 2
PAD_ID = 0        # tokenizer unk/pad token id
EPS = 1e-6
NEG_INF = -1e30


# ---------------------------------------------------------------------------
# Fused kernel: all decoder layers + final RMSNorm + v_head + score selection.
# One grid step per batch element.  No VMEM scratch needed.
# ---------------------------------------------------------------------------
def _fused_forward_kernel(idx_ref,                       # scalar-prefetch (B,) int32, SMEM
                          x_ref,                         # (1, S, D) token embeddings (f32)
                          ln1_ref, wqkv_ref, wo_ref,     # stacked per-layer params
                          ln2_ref, wgu_ref, wd_ref,
                          lnf_ref, vw_ref,               # final norm + v_head weight
                          out_ref):                      # (1, 1, 1) score
    b = pl.program_id(0)
    x = x_ref[0]                                         # (S, D) f32 residual stream
    S = x.shape[0]

    # hoisted causal mask / scale (shared across layers)
    row = lax.broadcasted_iota(jnp.int32, (S, S), 0)
    col = lax.broadcasted_iota(jnp.int32, (S, S), 1)
    causal = (col <= row)[None, :, :]                    # (1, S, S)
    scale = 1.0 / math.sqrt(HEAD_DIM)

    for l in range(N_LAYERS):                            # static unroll, x stays on-chip
        # --- pre-RMSNorm (f32 VPU) + fused QKV projection (bf16 MXU, f32 acc) ---
        var = jnp.mean(x * x, axis=-1, keepdims=True)
        xn = (x * lax.rsqrt(var + EPS) * ln1_ref[l]).astype(jnp.bfloat16)
        qkv = jnp.dot(xn, wqkv_ref[l],
                      preferred_element_type=jnp.float32)        # (S, 3D), one MXU pass
        qkv = qkv.astype(jnp.bfloat16)

        # head-major q/k/v built as VALUES (lane-slices + stack): no VMEM bounce,
        # no masked sub-lane stores.
        qh = jnp.stack([qkv[:, h * HEAD_DIM:(h + 1) * HEAD_DIM]
                        for h in range(N_HEADS)])                # (H, S, Dh) bf16
        kh = jnp.stack([qkv[:, D + h * HEAD_DIM:D + (h + 1) * HEAD_DIM]
                        for h in range(N_HEADS)])
        vh = jnp.stack([qkv[:, 2 * D + h * HEAD_DIM:2 * D + (h + 1) * HEAD_DIM]
                        for h in range(N_HEADS)])

        # --- causal multi-head attention (f32 softmax, bf16 matmuls) ----------
        s = jnp.einsum('hqd,hkd->hqk', qh, kh,
                       preferred_element_type=jnp.float32) * scale
        s = jnp.where(causal, s, NEG_INF)
        s = s - jnp.max(s, axis=-1, keepdims=True)
        p = jnp.exp(s)                                           # f32 (EUP)
        denom = jnp.sum(p, axis=-1, keepdims=True)
        oh = jnp.einsum('hqk,hkd->hqd', p.astype(jnp.bfloat16), vh,
                        preferred_element_type=jnp.float32)      # (H, S, Dh) f32
        oh = oh * pl.reciprocal(denom, approx=True)              # EUP slot

        # head-major output projection: batched einsum + leading-axis sum
        # (replaces the per-head re-flatten stores through VMEM scratch).
        attn = jnp.einsum('hqd,hdo->hqo', oh.astype(jnp.bfloat16), wo_ref[l],
                          preferred_element_type=jnp.float32)    # (H, S, D)
        x = x + jnp.sum(attn, axis=0)

        # --- pre-RMSNorm + SiLU-gated MLP (merged gate|up = 2F = 128 lanes) ---
        var2 = jnp.mean(x * x, axis=-1, keepdims=True)
        xn2 = (x * lax.rsqrt(var2 + EPS) * ln2_ref[l]).astype(jnp.bfloat16)
        gu = jnp.dot(xn2, wgu_ref[l],
                     preferred_element_type=jnp.float32)         # (S, 2F) f32
        g = gu[:, :F]
        u = gu[:, F:]
        m = g * jax.nn.sigmoid(g) * u                            # f32 VPU/EUP
        x = x + jnp.dot(m.astype(jnp.bfloat16), wd_ref[l],
                        preferred_element_type=jnp.float32)

    # --- score: one SMEM read of the precomputed row index, one-hot row select,
    #     single-row final RMSNorm + v_head dot -------------------------------
    idx = idx_ref[b]
    sel = lax.broadcasted_iota(jnp.int32, (S, 1), 0) == idx
    rowv = jnp.sum(jnp.where(sel, x, 0.0), axis=0, keepdims=True)   # (1, D)

    varf = jnp.mean(rowv * rowv, axis=-1, keepdims=True)
    rown = rowv * lax.rsqrt(varf + EPS) * lnf_ref[...]              # backbone final norm
    out_ref[0] = jnp.sum(rown * vw_ref[...], axis=-1, keepdims=True)   # (1, 1)


def gpt_reward_forward_impl(params, input_ids):
    B, S = input_ids.shape
    # embedding lookup (glue JAX, outside the kernel)
    x = jnp.take(params['wte'], input_ids, axis=0)                  # (B, S, D) f32

    # first-PAD score index precomputed here (one vectorized argmax) instead of
    # an S-step scalar loop at the kernel tail.  Matches torch rewards[i, c_ind-1]
    # including the negative-index wraparound when c_ind == 0.
    is_pad = (input_ids == PAD_ID)
    c_ind = jnp.where(jnp.any(is_pad, axis=1), jnp.argmax(is_pad, axis=1), S)
    score_idx = jnp.where(c_ind == 0, S - 1, c_ind - 1).astype(jnp.int32)   # (B,)

    const2 = lambda b, idx: (0, 0)
    const3 = lambda b, idx: (0, 0, 0)
    const4 = lambda b, idx: (0, 0, 0, 0)
    resident = pl.Buffered(1)   # constant index_map -> single-buffer the weights

    grid_spec = pltpu.PrefetchScalarGridSpec(
        num_scalar_prefetch=1,                            # score_idx -> SMEM
        grid=(B,),
        in_specs=[
            pl.BlockSpec((1, S, D), lambda b, idx: (b, 0, 0)),             # embeddings
            pl.BlockSpec((N_LAYERS, 1, D), const3, pipeline_mode=resident),            # ln1
            pl.BlockSpec((N_LAYERS, D, 3 * D), const3, pipeline_mode=resident),        # wqkv merged (bf16)
            pl.BlockSpec((N_LAYERS, N_HEADS, HEAD_DIM, D), const4,
                         pipeline_mode=resident),                                      # wo head-major (bf16)
            pl.BlockSpec((N_LAYERS, 1, D), const3, pipeline_mode=resident),            # ln2
            pl.BlockSpec((N_LAYERS, D, 2 * F), const3, pipeline_mode=resident),        # w_gate|w_up (bf16)
            pl.BlockSpec((N_LAYERS, F, D), const3, pipeline_mode=resident),            # w_down (bf16)
            pl.BlockSpec((1, D), const2, pipeline_mode=resident),                      # ln_f
            pl.BlockSpec((1, D), const2, pipeline_mode=resident),                      # v_head weight
        ],
        out_specs=pl.BlockSpec((1, 1, 1), lambda b, idx: (b, 0, 0)),
    )

    scores = pl.pallas_call(
        _fused_forward_kernel,
        out_shape=jax.ShapeDtypeStruct((B, 1, 1), jnp.float32),
        grid_spec=grid_spec,
        compiler_params=pltpu.CompilerParams(
            dimension_semantics=("parallel",),            # >=2 extent -> both v7x TCs used
            vmem_limit_bytes=32 * 1024 * 1024),
    )(score_idx, x,
      params['ln1'], params['wqkv'], params['wo'],
      params['ln2'], params['wgu'], params['wd'],
      params['ln_f'], params['v_head'])
    return scores[:, 0, 0]                                # (B,)


gpt_reward_forward = jax.jit(gpt_reward_forward_impl)


# ---------------------------------------------------------------------------
# Parameter init (deterministic, synthetic); matmul weights stored in bf16.
# ---------------------------------------------------------------------------
def init_params(key):
    def dense(k, shape, scale=0.02, dtype=jnp.float32):
        return (scale * jax.random.normal(k, shape, dtype=jnp.float32)).astype(dtype)

    ks = jax.random.split(key, 6)
    bf16 = jnp.bfloat16
    return {
        'wte': dense(ks[0], (VOCAB, D)),                                     # f32 embeddings
        'ln1': jnp.ones((N_LAYERS, 1, D), jnp.float32),
        'wqkv': dense(ks[1], (N_LAYERS, D, 3 * D), dtype=bf16),              # [Wq | Wk | Wv]
        'wo': dense(ks[2], (N_LAYERS, N_HEADS, HEAD_DIM, D), dtype=bf16),    # head-major W_o
        'ln2': jnp.ones((N_LAYERS, 1, D), jnp.float32),
        'wgu': dense(ks[3], (N_LAYERS, D, 2 * F), dtype=bf16),               # [W_gate | W_up]
        'wd': dense(ks[4], (N_LAYERS, F, D), dtype=bf16),
        'ln_f': jnp.ones((1, D), jnp.float32),
        'v_head': dense(ks[5], (1, D)),                                      # nn.Linear(n_embd, 1, bias=False)
    }


if __name__ == "__main__":
    key = jax.random.PRNGKey(0)
    pkey, ikey = jax.random.split(key)
    params = init_params(pkey)

    B, S = 2, 8
    # tokens in [1, VOCAB); PAD_ID == 0 is reserved for padding
    input_ids = jax.random.randint(ikey, (B, S), 1, VOCAB, dtype=jnp.int32)
    # first sequence is padded from position 5; second has no padding
    input_ids = input_ids.at[0, 5:].set(PAD_ID)

    scores = gpt_reward_forward(params, input_ids)
    scores = jax.block_until_ready(scores)
    assert scores.shape == (B,) and scores.dtype == jnp.float32
    print("KERNEL_OK")
</pallas_src>

<mosaic_0001>
module attributes {stable_mosaic.version = 11 : i64} {
  func.func @_fused_forward_kernel(%arg0: i32, %arg1: memref<2xi32, #tpu.memory_space<smem>>, %arg2: memref<1x8x32xf32, #tpu.memory_space<vmem>>, %arg3: memref<2x1x32xf32, #tpu.memory_space<vmem>>, %arg4: memref<2x32x96xbf16, #tpu.memory_space<vmem>>, %arg5: memref<2x4x8x32xbf16, #tpu.memory_space<vmem>>, %arg6: memref<2x1x32xf32, #tpu.memory_space<vmem>>, %arg7: memref<2x32x128xbf16, #tpu.memory_space<vmem>>, %arg8: memref<2x64x32xbf16, #tpu.memory_space<vmem>>, %arg9: memref<1x32xf32, #tpu.memory_space<vmem>>, %arg10: memref<1x32xf32, #tpu.memory_space<vmem>>, %arg11: memref<1x1x1xf32, #tpu.memory_space<vmem>>) attributes {dimension_semantics = [#tpu.dimension_semantics<parallel>], iteration_bounds = array<i64: 2>, scalar_prefetch = 1 : i64, scratch_operands = 0 : i64, tpu.core_type = #tpu.core_type<tc>, window_params = [{transform_indices = @transform_0, window_bounds = array<i64: 1, 8, 32>}, {pipeline_mode = #tpu.pipeline_mode<synchronous>, transform_indices = @transform_1, window_bounds = array<i64: 2, 1, 32>}, {pipeline_mode = #tpu.pipeline_mode<synchronous>, transform_indices = @transform_2, window_bounds = array<i64: 2, 32, 96>}, {pipeline_mode = #tpu.pipeline_mode<synchronous>, transform_indices = @transform_3, window_bounds = array<i64: 2, 4, 8, 32>}, {pipeline_mode = #tpu.pipeline_mode<synchronous>, transform_indices = @transform_4, window_bounds = array<i64: 2, 1, 32>}, {pipeline_mode = #tpu.pipeline_mode<synchronous>, transform_indices = @transform_5, window_bounds = array<i64: 2, 32, 128>}, {pipeline_mode = #tpu.pipeline_mode<synchronous>, transform_indices = @transform_6, window_bounds = array<i64: 2, 64, 32>}, {pipeline_mode = #tpu.pipeline_mode<synchronous>, transform_indices = @transform_7, window_bounds = array<i64: 1, 32>}, {pipeline_mode = #tpu.pipeline_mode<synchronous>, transform_indices = @transform_8, window_bounds = array<i64: 1, 32>}, {transform_indices = @transform_9, window_bounds = array<i64: 1, 1, 1>}]} {
    %c0 = arith.constant 0 : index
    %c0_0 = arith.constant 0 : index
    %c0_1 = arith.constant 0 : index
    %0 = vector.load %arg2[%c0, %c0_0, %c0_1] : memref<1x8x32xf32, #tpu.memory_space<vmem>>, vector<1x8x32xf32>
    %1 = vector.shape_cast %0 : vector<1x8x32xf32> to vector<8x32xf32>
    %2 = tpu.iota {dimensions = array<i32: 0>} : vector<8x8xi32>
    %3 = tpu.iota {dimensions = array<i32: 1>} : vector<8x8xi32>
    %4 = arith.cmpi sle, %3, %2 : vector<8x8xi32>
    %5 = vector.shape_cast %4 : vector<8x8xi1> to vector<1x8x8xi1>
    %6 = arith.mulf %1, %1 : vector<8x32xf32>
    %cst = arith.constant dense<0.000000e+00> : vector<8xf32>
    %7 = vector.multi_reduction <add>, %6, %cst [1] : vector<8x32xf32> to vector<8xf32>
    %8 = vector.shape_cast %7 : vector<8xf32> to vector<8x1xf32>
    %cst_2 = arith.constant 3.200000e+01 : f32
    %9 = vector.broadcast %cst_2 : f32 to vector<8x1xf32>
    %10 = arith.divf %8, %9 : vector<8x1xf32>
    %cst_3 = arith.constant 9.99999997E-7 : f32
    %11 = vector.broadcast %cst_3 : f32 to vector<8x1xf32>
    %12 = arith.addf %10, %11 : vector<8x1xf32>
    %13 = math.rsqrt %12 : vector<8x1xf32>
    %14 = vector.broadcast %13 : vector<8x1xf32> to vector<8x32xf32>
    %15 = arith.mulf %1, %14 : vector<8x32xf32>
    %c0_4 = arith.constant 0 : index
    %c0_5 = arith.constant 0 : index
    %c0_6 = arith.constant 0 : index
    %16 = vector.load %arg3[%c0_4, %c0_5, %c0_6] : memref<2x1x32xf32, #tpu.memory_space<vmem>>, vector<1x1x32xf32>
    %17 = vector.shape_cast %16 : vector<1x1x32xf32> to vector<1x32xf32>
    %18 = vector.broadcast %17 : vector<1x32xf32> to vector<8x32xf32>
    %19 = arith.mulf %15, %18 : vector<8x32xf32>
    %20 = arith.truncf %19 : vector<8x32xf32> to vector<8x32xbf16>
    %c0_7 = arith.constant 0 : index
    %c0_8 = arith.constant 0 : index
    %c0_9 = arith.constant 0 : index
    %21 = vector.load %arg4[%c0_7, %c0_8, %c0_9] : memref<2x32x96xbf16, #tpu.memory_space<vmem>>, vector<1x32x96xbf16>
    %22 = vector.shape_cast %21 : vector<1x32x96xbf16> to vector<32x96xbf16>
    %cst_10 = arith.constant dense<0.000000e+00> : vector<8x96xf32>
    %23 = tpu.matmul %20, %22, %cst_10 {dimension_numbers = #tpu.dot_dimension_numbers<[1], [0], [0], [1], [0, 0, 1, 1], [], []>} : vector<8x32xbf16>, vector<32x96xbf16>, vector<8x96xf32> -> vector<8x96xf32>
    %24 = arith.truncf %23 : vector<8x96xf32> to vector<8x96xbf16>
    %25 = vector.extract_strided_slice %24 {offsets = [0, 0], sizes = [8, 8], strides = [1, 1]} : vector<8x96xbf16> to vector<8x8xbf16>
    %26 = vector.extract_strided_slice %24 {offsets = [0, 8], sizes = [8, 8], strides = [1, 1]} : vector<8x96xbf16> to vector<8x8xbf16>
    %27 = vector.extract_strided_slice %24 {offsets = [0, 16], sizes = [8, 8], strides = [1, 1]} : vector<8x96xbf16> to vector<8x8xbf16>
    %28 = vector.extract_strided_slice %24 {offsets = [0, 24], sizes = [8, 8], strides = [1, 1]} : vector<8x96xbf16> to vector<8x8xbf16>
    %29 = vector.shape_cast %25 : vector<8x8xbf16> to vector<1x8x8xbf16>
    %30 = vector.shape_cast %26 : vector<8x8xbf16> to vector<1x8x8xbf16>
    %31 = vector.shape_cast %27 : vector<8x8xbf16> to vector<1x8x8xbf16>
    %32 = vector.shape_cast %28 : vector<8x8xbf16> to vector<1x8x8xbf16>
    %33 = tpu.concatenate %29, %30, %31, %32 in 0 : vector<1x8x8xbf16>, vector<1x8x8xbf16>, vector<1x8x8xbf16>, vector<1x8x8xbf16> -> vector<4x8x8xbf16>
    %34 = vector.extract_strided_slice %24 {offsets = [0, 32], sizes = [8, 8], strides = [1, 1]} : vector<8x96xbf16> to vector<8x8xbf16>
    %35 = vector.extract_strided_slice %24 {offsets = [0, 40], sizes = [8, 8], strides = [1, 1]} : vector<8x96xbf16> to vector<8x8xbf16>
    %36 = vector.extract_strided_slice %24 {offsets = [0, 48], sizes = [8, 8], strides = [1, 1]} : vector<8x96xbf16> to vector<8x8xbf16>
    %37 = vector.extract_strided_slice %24 {offsets = [0, 56], sizes = [8, 8], strides = [1, 1]} : vector<8x96xbf16> to vector<8x8xbf16>
    %38 = vector.shape_cast %34 : vector<8x8xbf16> to vector<1x8x8xbf16>
    %39 = vector.shape_cast %35 : vector<8x8xbf16> to vector<1x8x8xbf16>
    %40 = vector.shape_cast %36 : vector<8x8xbf16> to vector<1x8x8xbf16>
    %41 = vector.shape_cast %37 : vector<8x8xbf16> to vector<1x8x8xbf16>
    %42 = tpu.concatenate %38, %39, %40, %41 in 0 : vector<1x8x8xbf16>, vector<1x8x8xbf16>, vector<1x8x8xbf16>, vector<1x8x8xbf16> -> vector<4x8x8xbf16>
    %43 = vector.extract_strided_slice %24 {offsets = [0, 64], sizes = [8, 8], strides = [1, 1]} : vector<8x96xbf16> to vector<8x8xbf16>
    %44 = vector.extract_strided_slice %24 {offsets = [0, 72], sizes = [8, 8], strides = [1, 1]} : vector<8x96xbf16> to vector<8x8xbf16>
    %45 = vector.extract_strided_slice %24 {offsets = [0, 80], sizes = [8, 8], strides = [1, 1]} : vector<8x96xbf16> to vector<8x8xbf16>
    %46 = vector.extract_strided_slice %24 {offsets = [0, 88], sizes = [8, 8], strides = [1, 1]} : vector<8x96xbf16> to vector<8x8xbf16>
    %47 = vector.shape_cast %43 : vector<8x8xbf16> to vector<1x8x8xbf16>
    %48 = vector.shape_cast %44 : vector<8x8xbf16> to vector<1x8x8xbf16>
    %49 = vector.shape_cast %45 : vector<8x8xbf16> to vector<1x8x8xbf16>
    %50 = vector.shape_cast %46 : vector<8x8xbf16> to vector<1x8x8xbf16>
    %51 = tpu.concatenate %47, %48, %49, %50 in 0 : vector<1x8x8xbf16>, vector<1x8x8xbf16>, vector<1x8x8xbf16>, vector<1x8x8xbf16> -> vector<4x8x8xbf16>
    "tpu.trace_start"() <{level = 10 : i32, message = "hqd,hkd->hqk"}> : () -> ()
    %cst_11 = arith.constant dense<0.000000e+00> : vector<4x8x8xf32>
    %52 = tpu.matmul %33, %42, %cst_11 {dimension_numbers = #tpu.dot_dimension_numbers<[2], [2], [1], [1], [0, 0, 0, 1, 1, 1], [0], [0]>} : vector<4x8x8xbf16>, vector<4x8x8xbf16>, vector<4x8x8xf32> -> vector<4x8x8xf32>
    "tpu.trace_stop"() : () -> ()
    %cst_12 = arith.constant 0.353553385 : f32
    %53 = vector.broadcast %cst_12 : f32 to vector<4x8x8xf32>
    %54 = arith.mulf %52, %53 : vector<4x8x8xf32>
    %cst_13 = arith.constant -1.000000e+30 : f32
    %55 = vector.shape_cast %5 : vector<1x8x8xi1> to vector<1x8x8xi1>
    %56 = vector.broadcast %55 : vector<1x8x8xi1> to vector<4x8x8xi1>
    %57 = vector.broadcast %cst_13 : f32 to vector<4x8x8xf32>
    %58 = arith.select %56, %54, %57 : vector<4x8x8xi1>, vector<4x8x8xf32>
    %cst_14 = arith.constant dense<0xFF800000> : vector<4x8xf32>
    %59 = vector.multi_reduction <maximumf>, %58, %cst_14 [2] : vector<4x8x8xf32> to vector<4x8xf32>
    %60 = vector.shape_cast %59 : vector<4x8xf32> to vector<4x8x1xf32>
    %61 = vector.broadcast %60 : vector<4x8x1xf32> to vector<4x8x8xf32>
    %62 = arith.subf %58, %61 : vector<4x8x8xf32>
    %63 = math.exp %62 : vector<4x8x8xf32>
    %cst_15 = arith.constant dense<0.000000e+00> : vector<4x8xf32>
    %64 = vector.multi_reduction <add>, %63, %cst_15 [2] : vector<4x8x8xf32> to vector<4x8xf32>
    %65 = vector.shape_cast %64 : vector<4x8xf32> to vector<4x8x1xf32>
    %66 = arith.truncf %63 : vector<4x8x8xf32> to vector<4x8x8xbf16>
    "tpu.trace_start"() <{level = 10 : i32, message = "hqk,hkd->hqd"}> : () -> ()
    %cst_16 = arith.constant dense<0.000000e+00> : vector<4x8x8xf32>
    %67 = tpu.matmul %66, %51, %cst_16 {dimension_numbers = #tpu.dot_dimension_numbers<[2], [1], [1], [2], [0, 0, 0, 1, 1, 2], [0], [0]>} : vector<4x8x8xbf16>, vector<4x8x8xbf16>, vector<4x8x8xf32> -> vector<4x8x8xf32>
    "tpu.trace_stop"() : () -> ()
    %68 = tpu.reciprocal %65 {approx = true} : vector<4x8x1xf32> -> vector<4x8x1xf32>
    %69 = vector.broadcast %68 : vector<4x8x1xf32> to vector<4x8x8xf32>
    %70 = arith.mulf %67, %69 : vector<4x8x8xf32>
    %71 = arith.truncf %70 : vector<4x8x8xf32> to vector<4x8x8xbf16>
    %c0_17 = arith.constant 0 : index
    %c0_18 = arith.constant 0 : index
    %c0_19 = arith.constant 0 : index
    %c0_20 = arith.constant 0 : index
    %72 = vector.load %arg5[%c0_17, %c0_18, %c0_19, %c0_20] : memref<2x4x8x32xbf16, #tpu.memory_space<vmem>>, vector<1x4x8x32xbf16>
    %73 = vector.shape_cast %72 : vector<1x4x8x32xbf16> to vector<4x8x32xbf16>
    "tpu.trace_start"() <{level = 10 : i32, message = "hqd,hdo->hqo"}> : () -> ()
    %cst_21 = arith.constant dense<0.000000e+00> : vector<4x8x32xf32>
    %74 = tpu.matmul %71, %73, %cst_21 {dimension_numbers = #tpu.dot_dimension_numbers<[2], [1], [1], [2], [0, 0, 0, 1, 1, 2], [0], [0]>} : vector<4x8x8xbf16>, vector<4x8x32xbf16>, vector<4x8x32xf32> -> vector<4x8x32xf32>
    "tpu.trace_stop"() : () -> ()
    %cst_22 = arith.constant dense<0.000000e+00> : vector<8x32xf32>
    %75 = vector.multi_reduction <add>, %74, %cst_22 [0] : vector<4x8x32xf32> to vector<8x32xf32>
    %76 = arith.addf %1, %75 : vector<8x32xf32>
    %77 = arith.mulf %76, %76 : vector<8x32xf32>
    %cst_23 = arith.constant dense<0.000000e+00> : vector<8xf32>
    %78 = vector.multi_reduction <add>, %77, %cst_23 [1] : vector<8x32xf32> to vector<8xf32>
    %79 = vector.shape_cast %78 : vector<8xf32> to vector<8x1xf32>
    %cst_24 = arith.constant 3.200000e+01 : f32
    %80 = vector.broadcast %cst_24 : f32 to vector<8x1xf32>
    %81 = arith.divf %79, %80 : vector<8x1xf32>
    %cst_25 = arith.constant 9.99999997E-7 : f32
    %82 = vector.broadcast %cst_25 : f32 to vector<8x1xf32>
    %83 = arith.addf %81, %82 : vector<8x1xf32>
    %84 = math.rsqrt %83 : vector<8x1xf32>
    %85 = vector.broadcast %84 : vector<8x1xf32> to vector<8x32xf32>
    %86 = arith.mulf %76, %85 : vector<8x32xf32>
    %c0_26 = arith.constant 0 : index
    %c0_27 = arith.constant 0 : index
    %c0_28 = arith.constant 0 : index
    %87 = vector.load %arg6[%c0_26, %c0_27, %c0_28] : memref<2x1x32xf32, #tpu.memory_space<vmem>>, vector<1x1x32xf32>
    %88 = vector.shape_cast %87 : vector<1x1x32xf32> to vector<1x32xf32>
    %89 = vector.broadcast %88 : vector<1x32xf32> to vector<8x32xf32>
    %90 = arith.mulf %86, %89 : vector<8x32xf32>
    %91 = arith.truncf %90 : vector<8x32xf32> to vector<8x32xbf16>
    %c0_29 = arith.constant 0 : index
    %c0_30 = arith.constant 0 : index
    %c0_31 = arith.constant 0 : index
    %92 = vector.load %arg7[%c0_29, %c0_30, %c0_31] : memref<2x32x128xbf16, #tpu.memory_space<vmem>>, vector<1x32x128xbf16>
    %93 = vector.shape_cast %92 : vector<1x32x128xbf16> to vector<32x128xbf16>
    %cst_32 = arith.constant dense<0.000000e+00> : vector<8x128xf32>
    %94 = tpu.matmul %91, %93, %cst_32 {dimension_numbers = #tpu.dot_dimension_numbers<[1], [0], [0], [1], [0, 0, 1, 1], [], []>} : vector<8x32xbf16>, vector<32x128xbf16>, vector<8x128xf32> -> vector<8x128xf32>
    %95 = vector.extract_strided_slice %94 {offsets = [0, 0], sizes = [8, 64], strides = [1, 1]} : vector<8x128xf32> to vector<8x64xf32>
    %96 = vector.extract_strided_slice %94 {offsets = [0, 64], sizes = [8, 64], strides = [1, 1]} : vector<8x128xf32> to vector<8x64xf32>
    %97 = arith.negf %95 : vector<8x64xf32>
    %98 = math.exp %97 : vector<8x64xf32>
    %cst_33 = arith.constant 1.000000e+00 : f32
    %99 = vector.broadcast %cst_33 : f32 to vector<8x64xf32>
    %100 = arith.addf %99, %98 : vector<8x64xf32>
    %101 = arith.divf %99, %100 : vector<8x64xf32>
    %102 = arith.mulf %95, %101 : vector<8x64xf32>
    %103 = arith.mulf %102, %96 : vector<8x64xf32>
    %104 = arith.truncf %103 : vector<8x64xf32> to vector<8x64xbf16>
    %c0_34 = arith.constant 0 : index
    %c0_35 = arith.constant 0 : index
    %c0_36 = arith.constant 0 : index
    %105 = vector.load %arg8[%c0_34, %c0_35, %c0_36] : memref<2x64x32xbf16, #tpu.memory_space<vmem>>, vector<1x64x32xbf16>
    %106 = vector.shape_cast %105 : vector<1x64x32xbf16> to vector<64x32xbf16>
    %cst_37 = arith.constant dense<0.000000e+00> : vector<8x32xf32>
    %107 = tpu.matmul %104, %106, %cst_37 {dimension_numbers = #tpu.dot_dimension_numbers<[1], [0], [0], [1], [0, 0, 1, 1], [], []>} : vector<8x64xbf16>, vector<64x32xbf16>, vector<8x32xf32> -> vector<8x32xf32>
    %108 = arith.addf %76, %107 : vector<8x32xf32>
    %109 = arith.mulf %108, %108 : vector<8x32xf32>
    %cst_38 = arith.constant dense<0.000000e+00> : vector<8xf32>
    %110 = vector.multi_reduction <add>, %109, %cst_38 [1] : vector<8x32xf32> to vector<8xf32>
    %111 = vector.shape_cast %110 : vector<8xf32> to vector<8x1xf32>
    %cst_39 = arith.constant 3.200000e+01 : f32
    %112 = vector.broadcast %cst_39 : f32 to vector<8x1xf32>
    %113 = arith.divf %111, %112 : vector<8x1xf32>
    %cst_40 = arith.constant 9.99999997E-7 : f32
    %114 = vector.broadcast %cst_40 : f32 to vector<8x1xf32>
    %115 = arith.addf %113, %114 : vector<8x1xf32>
    %116 = math.rsqrt %115 : vector<8x1xf32>
    %117 = vector.broadcast %116 : vector<8x1xf32> to vector<8x32xf32>
    %118 = arith.mulf %108, %117 : vector<8x32xf32>
    %c1 = arith.constant 1 : index
    %c0_41 = arith.constant 0 : index
    %c0_42 = arith.constant 0 : index
    %119 = vector.load %arg3[%c1, %c0_41, %c0_42] : memref<2x1x32xf32, #tpu.memory_space<vmem>>, vector<1x1x32xf32>
    %120 = vector.shape_cast %119 : vector<1x1x32xf32> to vector<1x32xf32>
    %121 = vector.broadcast %120 : vector<1x32xf32> to vector<8x32xf32>
    %122 = arith.mulf %118, %121 : vector<8x32xf32>
    %123 = arith.truncf %122 : vector<8x32xf32> to vector<8x32xbf16>
    %c1_43 = arith.constant 1 : index
    %c0_44 = arith.constant 0 : index
    %c0_45 = arith.constant 0 : index
    %124 = vector.load %arg4[%c1_43, %c0_44, %c0_45] : memref<2x32x96xbf16, #tpu.memory_space<vmem>>, vector<1x32x96xbf16>
    %125 = vector.shape_cast %124 : vector<1x32x96xbf16> to vector<32x96xbf16>
    %cst_46 = arith.constant dense<0.000000e+00> : vector<8x96xf32>
    %126 = tpu.matmul %123, %125, %cst_46 {dimension_numbers = #tpu.dot_dimension_numbers<[1], [0], [0], [1], [0, 0, 1, 1], [], []>} : vector<8x32xbf16>, vector<32x96xbf16>, vector<8x96xf32> -> vector<8x96xf32>
    %127 = arith.truncf %126 : vector<8x96xf32> to vector<8x96xbf16>
    %128 = vector.extract_strided_slice %127 {offsets = [0, 0], sizes = [8, 8], strides = [1, 1]} : vector<8x96xbf16> to vector<8x8xbf16>
    %129 = vector.extract_strided_slice %127 {offsets = [0, 8], sizes = [8, 8], strides = [1, 1]} : vector<8x96xbf16> to vector<8x8xbf16>
    %130 = vector.extract_strided_slice %127 {offsets = [0, 16], sizes = [8, 8], strides = [1, 1]} : vector<8x96xbf16> to vector<8x8xbf16>
    %131 = vector.extract_strided_slice %127 {offsets = [0, 24], sizes = [8, 8], strides = [1, 1]} : vector<8x96xbf16> to vector<8x8xbf16>
    %132 = vector.shape_cast %128 : vector<8x8xbf16> to vector<1x8x8xbf16>
    %133 = vector.shape_cast %129 : vector<8x8xbf16> to vector<1x8x8xbf16>
    %134 = vector.shape_cast %130 : vector<8x8xbf16> to vector<1x8x8xbf16>
    %135 = vector.shape_cast %131 : vector<8x8xbf16> to vector<1x8x8xbf16>
    %136 = tpu.concatenate %132, %133, %134, %135 in 0 : vector<1x8x8xbf16>, vector<1x8x8xbf16>, vector<1x8x8xbf16>, vector<1x8x8xbf16> -> vector<4x8x8xbf16>
    %137 = vector.extract_strided_slice %127 {offsets = [0, 32], sizes = [8, 8], strides = [1, 1]} : vector<8x96xbf16> to vector<8x8xbf16>
    %138 = vector.extract_strided_slice %127 {offsets = [0, 40], sizes = [8, 8], strides = [1, 1]} : vector<8x96xbf16> to vector<8x8xbf16>
    %139 = vector.extract_strided_slice %127 {offsets = [0, 48], sizes = [8, 8], strides = [1, 1]} : vector<8x96xbf16> to vector<8x8xbf16>
    %140 = vector.extract_strided_slice %127 {offsets = [0, 56], sizes = [8, 8], strides = [1, 1]} : vector<8x96xbf16> to vector<8x8xbf16>
    %141 = vector.shape_cast %137 : vector<8x8xbf16> to vector<1x8x8xbf16>
    %142 = vector.shape_cast %138 : vector<8x8xbf16> to vector<1x8x8xbf16>
    %143 = vector.shape_cast %139 : vector<8x8xbf16> to vector<1x8x8xbf16>
    %144 = vector.shape_cast %140 : vector<8x8xbf16> to vector<1x8x8xbf16>
    %145 = tpu.concatenate %141, %142, %143, %144 in 0 : vector<1x8x8xbf16>, vector<1x8x8xbf16>, vector<1x8x8xbf16>, vector<1x8x8xbf16> -> vector<4x8x8xbf16>
    %146 = vector.extract_strided_slice %127 {offsets = [0, 64], sizes = [8, 8], strides = [1, 1]} : vector<8x96xbf16> to vector<8x8xbf16>
    %147 = vector.extract_strided_slice %127 {offsets = [0, 72], sizes = [8, 8], strides = [1, 1]} : vector<8x96xbf16> to vector<8x8xbf16>
    %148 = vector.extract_strided_slice %127 {offsets = [0, 80], sizes = [8, 8], strides = [1, 1]} : vector<8x96xbf16> to vector<8x8xbf16>
    %149 = vector.extract_strided_slice %127 {offsets = [0, 88], sizes = [8, 8], strides = [1, 1]} : vector<8x96xbf16> to vector<8x8xbf16>
    %150 = vector.shape_cast %146 : vector<8x8xbf16> to vector<1x8x8xbf16>
    %151 = vector.shape_cast %147 : vector<8x8xbf16> to vector<1x8x8xbf16>
    %152 = vector.shape_cast %148 : vector<8x8xbf16> to vector<1x8x8xbf16>
    %153 = vector.shape_cast %149 : vector<8x8xbf16> to vector<1x8x8xbf16>
    %154 = tpu.concatenate %150, %151, %152, %153 in 0 : vector<1x8x8xbf16>, vector<1x8x8xbf16>, vector<1x8x8xbf16>, vector<1x8x8xbf16> -> vector<4x8x8xbf16>
    "tpu.trace_start"() <{level = 10 : i32, message = "hqd,hkd->hqk"}> : () -> ()
    %cst_47 = arith.constant dense<0.000000e+00> : vector<4x8x8xf32>
    %155 = tpu.matmul %136, %145, %cst_47 {dimension_numbers = #tpu.dot_dimension_numbers<[2], [2], [1], [1], [0, 0, 0, 1, 1, 1], [0], [0]>} : vector<4x8x8xbf16>, vector<4x8x8xbf16>, vector<4x8x8xf32> -> vector<4x8x8xf32>
    "tpu.trace_stop"() : () -> ()
    %cst_48 = arith.constant 0.353553385 : f32
    %156 = vector.broadcast %cst_48 : f32 to vector<4x8x8xf32>
    %157 = arith.mulf %155, %156 : vector<4x8x8xf32>
    %cst_49 = arith.constant -1.000000e+30 : f32
    %158 = vector.shape_cast %5 : vector<1x8x8xi1> to vector<1x8x8xi1>
    %159 = vector.broadcast %158 : vector<1x8x8xi1> to vector<4x8x8xi1>
    %160 = vector.broadcast %cst_49 : f32 to vector<4x8x8xf32>
    %161 = arith.select %159, %157, %160 : vector<4x8x8xi1>, vector<4x8x8xf32>
    %cst_50 = arith.constant dense<0xFF800000> : vector<4x8xf32>
    %162 = vector.multi_reduction <maximumf>, %161, %cst_50 [2] : vector<4x8x8xf32> to vector<4x8xf32>
    %163 = vector.shape_cast %162 : vector<4x8xf32> to vector<4x8x1xf32>
    %164 = vector.broadcast %163 : vector<4x8x1xf32> to vector<4x8x8xf32>
    %165 = arith.subf %161, %164 : vector<4x8x8xf32>
    %166 = math.exp %165 : vector<4x8x8xf32>
    %cst_51 = arith.constant dense<0.000000e+00> : vector<4x8xf32>
    %167 = vector.multi_reduction <add>, %166, %cst_51 [2] : vector<4x8x8xf32> to vector<4x8xf32>
    %168 = vector.shape_cast %167 : vector<4x8xf32> to vector<4x8x1xf32>
    %169 = arith.truncf %166 : vector<4x8x8xf32> to vector<4x8x8xbf16>
    "tpu.trace_start"() <{level = 10 : i32, message = "hqk,hkd->hqd"}> : () -> ()
    %cst_52 = arith.constant dense<0.000000e+00> : vector<4x8x8xf32>
    %170 = tpu.matmul %169, %154, %cst_52 {dimension_numbers = #tpu.dot_dimension_numbers<[2], [1], [1], [2], [0, 0, 0, 1, 1, 2], [0], [0]>} : vector<4x8x8xbf16>, vector<4x8x8xbf16>, vector<4x8x8xf32> -> vector<4x8x8xf32>
    "tpu.trace_stop"() : () -> ()
    %171 = tpu.reciprocal %168 {approx = true} : vector<4x8x1xf32> -> vector<4x8x1xf32>
    %172 = vector.broadcast %171 : vector<4x8x1xf32> to vector<4x8x8xf32>
    %173 = arith.mulf %170, %172 : vector<4x8x8xf32>
    %174 = arith.truncf %173 : vector<4x8x8xf32> to vector<4x8x8xbf16>
    %c1_53 = arith.constant 1 : index
    %c0_54 = arith.constant 0 : index
    %c0_55 = arith.constant 0 : index
    %c0_56 = arith.constant 0 : index
    %175 = vector.load %arg5[%c1_53, %c0_54, %c0_55, %c0_56] : memref<2x4x8x32xbf16, #tpu.memory_space<vmem>>, vector<1x4x8x32xbf16>
    %176 = vector.shape_cast %175 : vector<1x4x8x32xbf16> to vector<4x8x32xbf16>
    "tpu.trace_start"() <{level = 10 : i32, message = "hqd,hdo->hqo"}> : () -> ()
    %cst_57 = arith.constant dense<0.000000e+00> : vector<4x8x32xf32>
    %177 = tpu.matmul %174, %176, %cst_57 {dimension_numbers = #tpu.dot_dimension_numbers<[2], [1], [1], [2], [0, 0, 0, 1, 1, 2], [0], [0]>} : vector<4x8x8xbf16>, vector<4x8x32xbf16>, vector<4x8x32xf32> -> vector<4x8x32xf32>
    "tpu.trace_stop"() : () -> ()
    %cst_58 = arith.constant dense<0.000000e+00> : vector<8x32xf32>
    %178 = vector.multi_reduction <add>, %177, %cst_58 [0] : vector<4x8x32xf32> to vector<8x32xf32>
    %179 = arith.addf %108, %178 : vector<8x32xf32>
    %180 = arith.mulf %179, %179 : vector<8x32xf32>
    %cst_59 = arith.constant dense<0.000000e+00> : vector<8xf32>
    %181 = vector.multi_reduction <add>, %180, %cst_59 [1] : vector<8x32xf32> to vector<8xf32>
    %182 = vector.shape_cast %181 : vector<8xf32> to vector<8x1xf32>
    %cst_60 = arith.constant 3.200000e+01 : f32
    %183 = vector.broadcast %cst_60 : f32 to vector<8x1xf32>
    %184 = arith.divf %182, %183 : vector<8x1xf32>
    %cst_61 = arith.constant 9.99999997E-7 : f32
    %185 = vector.broadcast %cst_61 : f32 to vector<8x1xf32>
    %186 = arith.addf %184, %185 : vector<8x1xf32>
    %187 = math.rsqrt %186 : vector<8x1xf32>
    %188 = vector.broadcast %187 : vector<8x1xf32> to vector<8x32xf32>
    %189 = arith.mulf %179, %188 : vector<8x32xf32>
    %c1_62 = arith.constant 1 : index
    %c0_63 = arith.constant 0 : index
    %c0_64 = arith.constant 0 : index
    %190 = vector.load %arg6[%c1_62, %c0_63, %c0_64] : memref<2x1x32xf32, #tpu.memory_space<vmem>>, vector<1x1x32xf32>
    %191 = vector.shape_cast %190 : vector<1x1x32xf32> to vector<1x32xf32>
    %192 = vector.broadcast %191 : vector<1x32xf32> to vector<8x32xf32>
    %193 = arith.mulf %189, %192 : vector<8x32xf32>
    %194 = arith.truncf %193 : vector<8x32xf32> to vector<8x32xbf16>
    %c1_65 = arith.constant 1 : index
    %c0_66 = arith.constant 0 : index
    %c0_67 = arith.constant 0 : index
    %195 = vector.load %arg7[%c1_65, %c0_66, %c0_67] : memref<2x32x128xbf16, #tpu.memory_space<vmem>>, vector<1x32x128xbf16>
    %196 = vector.shape_cast %195 : vector<1x32x128xbf16> to vector<32x128xbf16>
    %cst_68 = arith.constant dense<0.000000e+00> : vector<8x128xf32>
    %197 = tpu.matmul %194, %196, %cst_68 {dimension_numbers = #tpu.dot_dimension_numbers<[1], [0], [0], [1], [0, 0, 1, 1], [], []>} : vector<8x32xbf16>, vector<32x128xbf16>, vector<8x128xf32> -> vector<8x128xf32>
    %198 = vector.extract_strided_slice %197 {offsets = [0, 0], sizes = [8, 64], strides = [1, 1]} : vector<8x128xf32> to vector<8x64xf32>
    %199 = vector.extract_strided_slice %197 {offsets = [0, 64], sizes = [8, 64], strides = [1, 1]} : vector<8x128xf32> to vector<8x64xf32>
    %200 = arith.negf %198 : vector<8x64xf32>
    %201 = math.exp %200 : vector<8x64xf32>
    %cst_69 = arith.constant 1.000000e+00 : f32
    %202 = vector.broadcast %cst_69 : f32 to vector<8x64xf32>
    %203 = arith.addf %202, %201 : vector<8x64xf32>
    %204 = arith.divf %202, %203 : vector<8x64xf32>
    %205 = arith.mulf %198, %204 : vector<8x64xf32>
    %206 = arith.mulf %205, %199 : vector<8x64xf32>
    %207 = arith.truncf %206 : vector<8x64xf32> to vector<8x64xbf16>
    %c1_70 = arith.constant 1 : index
    %c0_71 = arith.constant 0 : index
    %c0_72 = arith.constant 0 : index
    %208 = vector.load %arg8[%c1_70, %c0_71, %c0_72] : memref<2x64x32xbf16, #tpu.memory_space<vmem>>, vector<1x64x32xbf16>
    %209 = vector.shape_cast %208 : vector<1x64x32xbf16> to vector<64x32xbf16>
    %cst_73 = arith.constant dense<0.000000e+00> : vector<8x32xf32>
    %210 = tpu.matmul %207, %209, %cst_73 {dimension_numbers = #tpu.dot_dimension_numbers<[1], [0], [0], [1], [0, 0, 1, 1], [], []>} : vector<8x64xbf16>, vector<64x32xbf16>, vector<8x32xf32> -> vector<8x32xf32>
    %211 = arith.addf %179, %210 : vector<8x32xf32>
    %212 = arith.index_cast %arg0 : i32 to index
    %213 = memref.load %arg1[%212] : memref<2xi32, #tpu.memory_space<smem>>
    %214 = tpu.iota {dimensions = array<i32: 0>} : vector<8x1xi32>
    %215 = vector.broadcast %213 : i32 to vector<8x1xi32>
    %216 = arith.cmpi eq, %214, %215 : vector<8x1xi32>
    %cst_74 = arith.constant 0.000000e+00 : f32
    %217 = vector.shape_cast %216 : vector<8x1xi1> to vector<8x1xi1>
    %218 = vector.broadcast %217 : vector<8x1xi1> to vector<8x32xi1>
    %219 = vector.broadcast %cst_74 : f32 to vector<8x32xf32>
    %220 = arith.select %218, %211, %219 : vector<8x32xi1>, vector<8x32xf32>
    %cst_75 = arith.constant dense<0.000000e+00> : vector<32xf32>
    %221 = vector.multi_reduction <add>, %220, %cst_75 [0] : vector<8x32xf32> to vector<32xf32>
    %222 = vector.shape_cast %221 : vector<32xf32> to vector<1x32xf32>
    %223 = arith.mulf %222, %222 : vector<1x32xf32>
    %cst_76 = arith.constant dense<0.000000e+00> : vector<1xf32>
    %224 = vector.multi_reduction <add>, %223, %cst_76 [1] : vector<1x32xf32> to vector<1xf32>
    %225 = vector.shape_cast %224 : vector<1xf32> to vector<1x1xf32>
    %cst_77 = arith.constant 3.200000e+01 : f32
    %226 = vector.broadcast %cst_77 : f32 to vector<1x1xf32>
    %227 = arith.divf %225, %226 : vector<1x1xf32>
    %cst_78 = arith.constant 9.99999997E-7 : f32
    %228 = vector.broadcast %cst_78 : f32 to vector<1x1xf32>
    %229 = arith.addf %227, %228 : vector<1x1xf32>
    %230 = math.rsqrt %229 : vector<1x1xf32>
    %231 = vector.broadcast %230 : vector<1x1xf32> to vector<1x32xf32>
    %232 = arith.mulf %222, %231 : vector<1x32xf32>
    %c0_79 = arith.constant 0 : index
    %c0_80 = arith.constant 0 : index
    %233 = vector.load %arg9[%c0_79, %c0_80] : memref<1x32xf32, #tpu.memory_space<vmem>>, vector<1x32xf32>
    %234 = arith.mulf %232, %233 : vector<1x32xf32>
    %c0_81 = arith.constant 0 : index
    %c0_82 = arith.constant 0 : index
    %235 = vector.load %arg10[%c0_81, %c0_82] : memref<1x32xf32, #tpu.memory_space<vmem>>, vector<1x32xf32>
    %236 = arith.mulf %234, %235 : vector<1x32xf32>
    %cst_83 = arith.constant dense<0.000000e+00> : vector<1xf32>
    %237 = vector.multi_reduction <add>, %236, %cst_83 [1] : vector<1x32xf32> to vector<1xf32>
    %238 = vector.shape_cast %237 : vector<1xf32> to vector<1x1xf32>
    %c0_84 = arith.constant 0 : index
    %c0_85 = arith.constant 0 : index
    %c0_86 = arith.constant 0 : index
    %239 = vector.load %arg11[%c0_84, %c0_85, %c0_86] : memref<1x1x1xf32, #tpu.memory_space<vmem>>, vector<1x1x1xf32>
    %240 = vector.shape_cast %239 : vector<1x1x1xf32> to vector<1x1xf32>
    %241 = vector.shape_cast %238 : vector<1x1xf32> to vector<1x1x1xf32>
    tpu.vector_store %arg11[%c0_84, %c0_85, %c0_86], %241 {strides = array<i32>} : memref<1x1x1xf32, #tpu.memory_space<vmem>>, vector<1x1x1xf32>,
    return
  }
  func.func @transform_0(%arg0: i32, %arg1: memref<2xi32, #tpu.memory_space<smem>>) -> (i32, i32, i32) {
    %c0_i32 = arith.constant 0 : i32
    %c0_i32_0 = arith.constant 0 : i32
    %c0_i32_1 = arith.constant 0 : i32
    return %arg0, %c0_i32, %c0_i32_0 : i32, i32, i32
  }
  func.func @transform_1(%arg0: i32, %arg1: memref<2xi32, #tpu.memory_space<smem>>) -> (i32, i32, i32) {
    %c0_i32 = arith.constant 0 : i32
    %c0_i32_0 = arith.constant 0 : i32
    %c0_i32_1 = arith.constant 0 : i32
    %c0_i32_2 = arith.constant 0 : i32
    return %c0_i32, %c0_i32_0, %c0_i32_1 : i32, i32, i32
  }
  func.func @transform_2(%arg0: i32, %arg1: memref<2xi32, #tpu.memory_space<smem>>) -> (i32, i32, i32) {
    %c0_i32 = arith.constant 0 : i32
    %c0_i32_0 = arith.constant 0 : i32
    %c0_i32_1 = arith.constant 0 : i32
    %c0_i32_2 = arith.constant 0 : i32
    return %c0_i32, %c0_i32_0, %c0_i32_1 : i32, i32, i32
  }
  func.func @transform_3(%arg0: i32, %arg1: memref<2xi32, #tpu.memory_space<smem>>) -> (i32, i32, i32, i32) {
    %c0_i32 = arith.constant 0 : i32
    %c0_i32_0 = arith.constant 0 : i32
    %c0_i32_1 = arith.constant 0 : i32
    %c0_i32_2 = arith.constant 0 : i32
    %c0_i32_3 = arith.constant 0 : i32
    return %c0_i32, %c0_i32_0, %c0_i32_1, %c0_i32_2 : i32, i32, i32, i32
  }
  func.func @transform_4(%arg0: i32, %arg1: memref<2xi32, #tpu.memory_space<smem>>) -> (i32, i32, i32) {
    %c0_i32 = arith.constant 0 : i32
    %c0_i32_0 = arith.constant 0 : i32
    %c0_i32_1 = arith.constant 0 : i32
    %c0_i32_2 = arith.constant 0 : i32
    return %c0_i32, %c0_i32_0, %c0_i32_1 : i32, i32, i32
  }
  func.func @transform_5(%arg0: i32, %arg1: memref<2xi32, #tpu.memory_space<smem>>) -> (i32, i32, i32) {
    %c0_i32 = arith.constant 0 : i32
    %c0_i32_0 = arith.constant 0 : i32
    %c0_i32_1 = arith.constant 0 : i32
    %c0_i32_2 = arith.constant 0 : i32
    return %c0_i32, %c0_i32_0, %c0_i32_1 : i32, i32, i32
  }
  func.func @transform_6(%arg0: i32, %arg1: memref<2xi32, #tpu.memory_space<smem>>) -> (i32, i32, i32) {
    %c0_i32 = arith.constant 0 : i32
    %c0_i32_0 = arith.constant 0 : i32
    %c0_i32_1 = arith.constant 0 : i32
    %c0_i32_2 = arith.constant 0 : i32
    return %c0_i32, %c0_i32_0, %c0_i32_1 : i32, i32, i32
  }
  func.func @transform_7(%arg0: i32, %arg1: memref<2xi32, #tpu.memory_space<smem>>) -> (i32, i32) {
    %c0_i32 = arith.constant 0 : i32
    %c0_i32_0 = arith.constant 0 : i32
    %c0_i32_1 = arith.constant 0 : i32
    return %c0_i32, %c0_i32_0 : i32, i32
  }
  func.func @transform_8(%arg0: i32, %arg1: memref<2xi32, #tpu.memory_space<smem>>) -> (i32, i32) {
    %c0_i32 = arith.constant 0 : i32
    %c0_i32_0 = arith.constant 0 : i32
    %c0_i32_1 = arith.constant 0 : i32
    return %c0_i32, %c0_i32_0 : i32, i32
  }
  func.func @transform_9(%arg0: i32, %arg1: memref<2xi32, #tpu.memory_space<smem>>) -> (i32, i32, i32) {
    %c0_i32 = arith.constant 0 : i32
    %c0_i32_0 = arith.constant 0 : i32
    %c0_i32_1 = arith.constant 0 : i32
    return %arg0, %c0_i32, %c0_i32_0 : i32, i32, i32
  }
}

</mosaic_0001>

<llo_original>
// kernel: gpt_reward_forward_impl.1
$region0: #{gpt_reward_forward_impl.1}
  #allocation0 [shape = 'u32[]', space=smem, size = 0x4, offset = 0x4, fixed_abs, tag = 'smem constant byte address 0x4 - core index']
  #allocation1 [shape = 'u32[144,128]{1,0:T(1,128)}', space=vmem, size = 0x12000, scoped, tag = 'internal scratch']
  #allocation2 [shape = 's32[1]{0}', space=sflag, size = 0x4, scoped, tag = 'scoped memory for gpt_reward_forward_impl.1']
  #allocation3 [shape = 'u8[512]{0}', space=smem, size = 0x200, scoped, tag = 'prefetched SMEM operand 0']
  %s0 = inlined_call_operand.vmem [shape: s32[2], index: 0, kind: input, shape index: {}]
  %s1 = inlined_call_operand.vmem [shape: f32[2,8,32], index: 1, kind: input, shape index: {}]
  %s2 = inlined_call_operand.vmem [shape: f32[2,1,32], index: 2, kind: input, shape index: {}]
  %s3 = inlined_call_operand.vmem [shape: bf16[2,32,96], index: 3, kind: input, shape index: {}]
  %s4 = inlined_call_operand.vmem [shape: bf16[2,4,8,32], index: 4, kind: input, shape index: {}]
  %s5 = inlined_call_operand.vmem [shape: f32[2,1,32], index: 5, kind: input, shape index: {}]
  %s6 = inlined_call_operand.vmem [shape: bf16[2,32,128], index: 6, kind: input, shape index: {}]
  %s7 = inlined_call_operand.vmem [shape: bf16[2,64,32], index: 7, kind: input, shape index: {}]
  %s8 = inlined_call_operand.vmem [shape: f32[1,32], index: 8, kind: input, shape index: {}]
  %s9 = inlined_call_operand.vmem [shape: f32[1,32], index: 9, kind: input, shape index: {}]
  %s10 = inlined_call_operand.vmem [shape: f32[2,1,1], index: 10, kind: output, shape index: {}]
  %s11 = sld [smem:[#allocation0]]
  $region69: #{gpt_reward_forward_impl.1} parent=0
    _
  %s13 = ssub.s32 1, %s11
  %s14 = scalar_select 0, %s13, %s11
  %s15 = sshll.u32 %s0, 4
  %s16 = int_to_ptr.vmem [resolvable:$true] %s15
  %18 = dma.vmem_to_smem %s16, 16, [#allocation3], [#allocation2]
  %19 = dma.done [#allocation2], 16
  %20 = sfence
  loop: start=0, step=1, limit=4
  $region2: #{gpt_reward_forward_impl.1} parent=0 // loop_pre_header
    _
  $region3: #{gpt_reward_forward_impl.1} parent=0 // loop_header
    %s22 = sphi 0, %s26
    %p23 = scmp.ge.s32.totalorder %s22, 4
    %s32 = sphi 0, %s34
    %s35 = sphi 0, %s32
    %s36 = sphi 0, %s35
    %s52 = sphi 0, %s36
    %s56 = sphi 0, %s56
    %s58 = sphi 0, %s56
    %s59 = sphi 0, %s58
    %s73 = sphi 0, %s59
    %s77 = sphi 0, %s77
    %s79 = sphi 0, %s77
    %s80 = sphi 0, %s79
    %s94 = sphi 0, %s80
    %s98 = sphi 0, %s98
    %s100 = sphi 0, %s98
    %s101 = sphi 0, %s100
    %s115 = sphi 0, %s101
    %s119 = sphi 0, %s119
    %s121 = sphi 0, %s119
    %s122 = sphi 0, %s121
    %s136 = sphi 0, %s122
    %s140 = sphi 0, %s140
    %s142 = sphi 0, %s140
    %s143 = sphi 0, %s142
    %s157 = sphi 0, %s143
    %s161 = sphi 0, %s161
    %s163 = sphi 0, %s161
    %s164 = sphi 0, %s163
    %s178 = sphi 0, %s164
    %s182 = sphi 0, %s182
    %s184 = sphi 0, %s182
    %s185 = sphi 0, %s184
    %s199 = sphi 0, %s185
    %s203 = sphi 0, %s203
    %s205 = sphi 0, %s203
    %s206 = sphi 0, %s205
    %s220 = sphi 0, %s206
    %s226 = sphi 0, %s228
    %s229 = sphi 0, %s226
    %s230 = sphi 0, %s229
    %s246 = sphi 0, %s230
  $region4: #{gpt_reward_forward_impl.1} parent=0 // loop_header_branch
    %25 = sbr.rel (%p23) target = $region8
  $region5: #{gpt_reward_forward_impl.1} parent=0 // loop_body
    %s27 = ssub.s32 %s22, 1
    %s28 = ssub.s32 %s22, 2
    %s29 = sadd.s32 %s22, 1
    %s30 = ssub.s32 %s22, %s29
    %p31 = scmp.eq.s32.totalorder %s30, 0
    %s33 = sadd.s32 %s32, 1
    %s34 = scalar_select %p31, %s32, %s33
    %p37 = pneg %p31
    %p38 = scmp.eq.s32.totalorder %s22, 1
    %p39 = por %p37, %p38
    %p40 = scmp.ne.s32.totalorder %s32, %s35
    %p41 = scmp.eq.s32.totalorder %s22, 0
    %p42 = por %p40, %p41
    %p43 = scmp.ne.s32.totalorder %s32, %s35
    %p44 = scmp.eq.s32.totalorder %s27, 1
    %p45 = por %p43, %p44
    %p46 = scmp.ne.s32.totalorder %s35, %s36
    %p47 = scmp.eq.s32.totalorder %s27, 0
    %p48 = por %p46, %p47
    %p49 = scmp.ne.s32.totalorder %s35, %s36
    %p50 = scmp.eq.s32.totalorder %s28, 1
    %p51 = por %p49, %p50
    %p53 = scmp.ne.s32.totalorder %s36, %s52
    %p54 = scmp.eq.s32.totalorder %s28, 0
    %p55 = por %p53, %p54
    %s57 = sadd.s32 %s56, 1
    %p60 = scmp.eq.s32.totalorder %s22, 1
    %p61 = scmp.ne.s32.totalorder %s56, %s58
    %p62 = scmp.eq.s32.totalorder %s22, 0
    %p63 = por %p61, %p62
    %p64 = scmp.ne.s32.totalorder %s56, %s58
    %p65 = scmp.eq.s32.totalorder %s27, 1
    %p66 = por %p64, %p65
    %p67 = scmp.ne.s32.totalorder %s58, %s59
    %p68 = scmp.eq.s32.totalorder %s27, 0
    %p69 = por %p67, %p68
    %p70 = scmp.ne.s32.totalorder %s58, %s59
    %p71 = scmp.eq.s32.totalorder %s28, 1
    %p72 = por %p70, %p71
    %p74 = scmp.ne.s32.totalorder %s59, %s73
    %p75 = scmp.eq.s32.totalorder %s28, 0
    %p76 = por %p74, %p75
    %s78 = sadd.s32 %s77, 1
    %p81 = scmp.eq.s32.totalorder %s22, 1
    %p82 = scmp.ne.s32.totalorder %s77, %s79
    %p83 = scmp.eq.s32.totalorder %s22, 0
    %p84 = por %p82, %p83
    %p85 = scmp.ne.s32.totalorder %s77, %s79
    %p86 = scmp.eq.s32.totalorder %s27, 1
    %p87 = por %p85, %p86
    %p88 = scmp.ne.s32.totalorder %s79, %s80
    %p89 = scmp.eq.s32.totalorder %s27, 0
    %p90 = por %p88, %p89
    %p91 = scmp.ne.s32.totalorder %s79, %s80
    %p92 = scmp.eq.s32.totalorder %s28, 1
    %p93 = por %p91, %p92
    %p95 = scmp.ne.s32.totalorder %s80, %s94
    %p96 = scmp.eq.s32.totalorder %s28, 0
    %p97 = por %p95, %p96
    %s99 = sadd.s32 %s98, 1
    %p102 = scmp.eq.s32.totalorder %s22, 1
    %p103 = scmp.ne.s32.totalorder %s98, %s100
    %p104 = scmp.eq.s32.totalorder %s22, 0
    %p105 = por %p103, %p104
    %p106 = scmp.ne.s32.totalorder %s98, %s100
    %p107 = scmp.eq.s32.totalorder %s27, 1
    %p108 = por %p106, %p107
    %p109 = scmp.ne.s32.totalorder %s100, %s101
    %p110 = scmp.eq.s32.totalorder %s27, 0
    %p111 = por %p109, %p110
    %p112 = scmp.ne.s32.totalorder %s100, %s101
    %p113 = scmp.eq.s32.totalorder %s28, 1
    %p114 = por %p112, %p113
    %p116 = scmp.ne.s32.totalorder %s101, %s115
    %p117 = scmp.eq.s32.totalorder %s28, 0
    %p118 = por %p116, %p117
    %s120 = sadd.s32 %s119, 1
    %p123 = scmp.eq.s32.totalorder %s22, 1
    %p124 = scmp.ne.s32.totalorder %s119, %s121
    %p125 = scmp.eq.s32.totalorder %s22, 0
    %p126 = por %p124, %p125
    %p127 = scmp.ne.s32.totalorder %s119, %s121
    %p128 = scmp.eq.s32.totalorder %s27, 1
    %p129 = por %p127, %p128
    %p130 = scmp.ne.s32.totalorder %s121, %s122
    %p131 = scmp.eq.s32.totalorder %s27, 0
    %p132 = por %p130, %p131
    %p133 = scmp.ne.s32.totalorder %s121, %s122
    %p134 = scmp.eq.s32.totalorder %s28, 1
    %p135 = por %p133, %p134
    %p137 = scmp.ne.s32.totalorder %s122, %s136
    %p138 = scmp.eq.s32.totalorder %s28, 0
    %p139 = por %p137, %p138
    %s141 = sadd.s32 %s140, 1
    %p144 = scmp.eq.s32.totalorder %s22, 1
    %p145 = scmp.ne.s32.totalorder %s140, %s142
    %p146 = scmp.eq.s32.totalorder %s22, 0
    %p147 = por %p145, %p146
    %p148 = scmp.ne.s32.totalorder %s140, %s142
    %p149 = scmp.eq.s32.totalorder %s27, 1
    %p150 = por %p148, %p149
    %p151 = scmp.ne.s32.totalorder %s142, %s143
    %p152 = scmp.eq.s32.totalorder %s27, 0
    %p153 = por %p151, %p152
    %p154 = scmp.ne.s32.totalorder %s142, %s143
    %p155 = scmp.eq.s32.totalorder %s28, 1
    %p156 = por %p154, %p155
    %p158 = scmp.ne.s32.totalorder %s143, %s157
    %p159 = scmp.eq.s32.totalorder %s28, 0
    %p160 = por %p158, %p159
    %s162 = sadd.s32 %s161, 1
    %p165 = scmp.eq.s32.totalorder %s22, 1
    %p166 = scmp.ne.s32.totalorder %s161, %s163
    %p167 = scmp.eq.s32.totalorder %s22, 0
    %p168 = por %p166, %p167
    %p169 = scmp.ne.s32.totalorder %s161, %s163
    %p170 = scmp.eq.s32.totalorder %s27, 1
    %p171 = por %p169, %p170
    %p172 = scmp.ne.s32.totalorder %s163, %s164
    %p173 = scmp.eq.s32.totalorder %s27, 0
    %p174 = por %p172, %p173
    %p175 = scmp.ne.s32.totalorder %s163, %s164
    %p176 = scmp.eq.s32.totalorder %s28, 1
    %p177 = por %p175, %p176
    %p179 = scmp.ne.s32.totalorder %s164, %s178
    %p180 = scmp.eq.s32.totalorder %s28, 0
    %p181 = por %p179, %p180
    %s183 = sadd.s32 %s182, 1
    %p186 = scmp.eq.s32.totalorder %s22, 1
    %p187 = scmp.ne.s32.totalorder %s182, %s184
    %p188 = scmp.eq.s32.totalorder %s22, 0
    %p189 = por %p187, %p188
    %p190 = scmp.ne.s32.totalorder %s182, %s184
    %p191 = scmp.eq.s32.totalorder %s27, 1
    %p192 = por %p190, %p191
    %p193 = scmp.ne.s32.totalorder %s184, %s185
    %p194 = scmp.eq.s32.totalorder %s27, 0
    %p195 = por %p193, %p194
    %p196 = scmp.ne.s32.totalorder %s184, %s185
    %p197 = scmp.eq.s32.totalorder %s28, 1
    %p198 = por %p196, %p197
    %p200 = scmp.ne.s32.totalorder %s185, %s199
    %p201 = scmp.eq.s32.totalorder %s28, 0
    %p202 = por %p200, %p201
    %s204 = sadd.s32 %s203, 1
    %p207 = scmp.eq.s32.totalorder %s22, 1
    %p208 = scmp.ne.s32.totalorder %s203, %s205
    %p209 = scmp.eq.s32.totalorder %s22, 0
    %p210 = por %p208, %p209
    %p211 = scmp.ne.s32.totalorder %s203, %s205
    %p212 = scmp.eq.s32.totalorder %s27, 1
    %p213 = por %p211, %p212
    %p214 = scmp.ne.s32.totalorder %s205, %s206
    %p215 = scmp.eq.s32.totalorder %s27, 0
    %p216 = por %p214, %p215
    %p217 = scmp.ne.s32.totalorder %s205, %s206
    %p218 = scmp.eq.s32.totalorder %s28, 1
    %p219 = por %p217, %p218
    %p221 = scmp.ne.s32.totalorder %s206, %s220
    %p222 = scmp.eq.s32.totalorder %s28, 0
    %p223 = por %p221, %p222
    %s224 = ssub.s32 %s22, %s29
    %p225 = scmp.eq.s32.totalorder %s224, 0
    %s227 = sadd.s32 %s226, 1
    %s228 = scalar_select %p225, %s226, %s227
    %p231 = pneg %p225
    %p232 = scmp.eq.s32.totalorder %s22, 1
    %p233 = por %p231, %p232
    %p234 = scmp.ne.s32.totalorder %s226, %s229
    %p235 = scmp.eq.s32.totalorder %s22, 0
    %p236 = por %p234, %p235
    %p237 = scmp.ne.s32.totalorder %s226, %s229
    %p238 = scmp.eq.s32.totalorder %s27, 1
    %p239 = por %p237, %p238
    %p240 = scmp.ne.s32.totalorder %s229, %s230
    %p241 = scmp.eq.s32.totalorder %s27, 0
    %p242 = por %p240, %p241
    %p243 = scmp.ne.s32.totalorder %s229, %s230
    %p244 = scmp.eq.s32.totalorder %s28, 1
    %p245 = por %p243, %p244
    %p247 = scmp.ne.s32.totalorder %s230, %s246
    %p248 = scmp.eq.s32.totalorder %s28, 0
    %p249 = por %p247, %p248
    %p250 = scmp.le.s32.totalorder 1, %s22
    %p251 = scmp.lt.s32.totalorder %s22, 3
    %p252 = pnand %p250, %p251
    %p253 = pneg %p252
    // Predicated region
    $region9: #{gpt_reward_forward_impl.1} parent=5 // pred_check
      _
    $region10: #{gpt_reward_forward_impl.1} parent=5 // pred_check_branch
      %255 = sbr.rel (%p252) target = $region12
    $region11: #{gpt_reward_forward_impl.1} parent=5 // pred_region
      %s256 = ssub.s32 %s22, 1
      // Predicated region
      $region13: #{gpt_reward_forward_impl.1} parent=11 // pred_check
        %p257 = pneg %p69
      $region14: #{gpt_reward_forward_impl.1} parent=11 // pred_check_branch
        %259 = sbr.rel (%p257) target = $region16
      $region15: #{gpt_reward_forward_impl.1} parent=11 // pred_region
        _
      $region16: #{gpt_reward_forward_impl.1} parent=11 // pred_fallthru
        _
      // Predicated region
      $region17: #{gpt_reward_forward_impl.1} parent=11 // pred_check
        %p260 = pneg %p90
      $region18: #{gpt_reward_forward_impl.1} parent=11 // pred_check_branch
        %262 = sbr.rel (%p260) target = $region20
      $region19: #{gpt_reward_forward_impl.1} parent=11 // pred_region
        _
      $region20: #{gpt_reward_forward_impl.1} parent=11 // pred_fallthru
        _
      // Predicated region
      $region21: #{gpt_reward_forward_impl.1} parent=11 // pred_check
        %p263 = pneg %p111
      $region22: #{gpt_reward_forward_impl.1} parent=11 // pred_check_branch
        %265 = sbr.rel (%p263) target = $region24
      $region23: #{gpt_reward_forward_impl.1} parent=11 // pred_region
        _
      $region24: #{gpt_reward_forward_impl.1} parent=11 // pred_fallthru
        _
      // Predicated region
      $region25: #{gpt_reward_forward_impl.1} parent=11 // pred_check
        %p266 = pneg %p132
      $region26: #{gpt_reward_forward_impl.1} parent=11 // pred_check_branch
        %268 = sbr.rel (%p266) target = $region28
      $region27: #{gpt_reward_forward_impl.1} parent=11 // pred_region
        _
      $region28: #{gpt_reward_forward_impl.1} parent=11 // pred_fallthru
        _
      // Predicated region
      $region29: #{gpt_reward_forward_impl.1} parent=11 // pred_check
        %p269 = pneg %p153
      $region30: #{gpt_reward_forward_impl.1} parent=11 // pred_check_branch
        %271 = sbr.rel (%p269) target = $region32
      $region31: #{gpt_reward_forward_impl.1} parent=11 // pred_region
        _
      $region32: #{gpt_reward_forward_impl.1} parent=11 // pred_fallthru
        _
      // Predicated region
      $region33: #{gpt_reward_forward_impl.1} parent=11 // pred_check
        %p272 = pneg %p174
      $region34: #{gpt_reward_forward_impl.1} parent=11 // pred_check_branch
        %274 = sbr.rel (%p272) target = $region36
      $region35: #{gpt_reward_forward_impl.1} parent=11 // pred_region
        _
      $region36: #{gpt_reward_forward_impl.1} parent=11 // pred_fallthru
        _
      // Predicated region
      $region37: #{gpt_reward_forward_impl.1} parent=11 // pred_check
        %p275 = pneg %p195
      $region38: #{gpt_reward_forward_impl.1} parent=11 // pred_check_branch
        %277 = sbr.rel (%p275) target = $region40
      $region39: #{gpt_reward_forward_impl.1} parent=11 // pred_region
        _
      $region40: #{gpt_reward_forward_impl.1} parent=11 // pred_fallthru
        _
      // Predicated region
      $region41: #{gpt_reward_forward_impl.1} parent=11 // pred_check
        %p278 = pneg %p216
      $region42: #{gpt_reward_forward_impl.1} parent=11 // pred_check_branch
        %280 = sbr.rel (%p278) target = $region44
      $region43: #{gpt_reward_forward_impl.1} parent=11 // pred_region
        _
      $region44: #{gpt_reward_forward_impl.1} parent=11 // pred_fallthru
        _
    $region12: #{gpt_reward_forward_impl.1} parent=5 // pred_fallthru
      _
    %p281 = scmp.lt.s32.totalorder %s22, 2
    // Predicated region
    $region45: #{gpt_reward_forward_impl.1} parent=5 // pred_check
      %p282 = pneg %p281
    $region46: #{gpt_reward_forward_impl.1} parent=5 // pred_check_branch
      %284 = sbr.rel (%p282) target = $region48
    $region47: #{gpt_reward_forward_impl.1} parent=5 // pred_region
      // Predicated region
      $region49: #{gpt_reward_forward_impl.1} parent=47 // pred_check
        %p285 = pneg %p42
      $region50: #{gpt_reward_forward_impl.1} parent=47 // pred_check_branch
        %287 = sbr.rel (%p285) target = $region52
      $region51: #{gpt_reward_forward_impl.1} parent=47 // pred_region
        %p288 = scmp.lt.s32.totalorder %s22, 1
        %s289 = scalar_select %p288, %s22, 1
        %s290 = smul.addr %s289, 8
        %s291 = scalar_lea.vmem %s1, %s290
      $region52: #{gpt_reward_forward_impl.1} parent=47 // pred_fallthru
        _
    $region48: #{gpt_reward_forward_impl.1} parent=5 // pred_fallthru
      _
    %p292 = scmp.le.s32.totalorder 1, %s22
    %p293 = scmp.lt.s32.totalorder %s22, 3
    %p294 = pnand %p292, %p293
    %p295 = pneg %p294
    // Predicated region
    $region53: #{gpt_reward_forward_impl.1} parent=5 // pred_check
      _
    $region54: #{gpt_reward_forward_impl.1} parent=5 // pred_check_branch
      %297 = sbr.rel (%p294) target = $region56
    $region55: #{gpt_reward_forward_impl.1} parent=5 // pred_region
      %s298 = ssub.s32 %s22, 1
      %p299 = scmp.lt.s32.totalorder %s27, 1
      %s300 = scalar_select %p299, %s27, 1
      %s301 = smul.addr %s300, 8
      %s302 = scalar_lea.vmem %s1, %s301
      %p303 = pneg %p48
      %p304 = pneg %p45
      %p305 = pneg %p69
      %p306 = pneg %p66
      %p307 = pneg %p90
      %p308 = pneg %p87
      %p309 = pneg %p111
      %p310 = pneg %p108
      %p311 = pneg %p132
      %p312 = pneg %p129
      %p313 = pneg %p153
      %p314 = pneg %p150
      %p315 = pneg %p174
      %p316 = pneg %p171
      %p317 = pneg %p195
      %p318 = pneg %p192
      %p319 = pneg %p216
      %p320 = pneg %p213
      %p321 = pneg %p242
      %p322 = pneg %p239
      %p323 = scmp.lt.s32.totalorder %s27, 1
      %s324 = scalar_select %p323, %s27, 1
      %s325 = scalar_lea.vmem %s10, %s324
      %p326 = scmp.lt.s32.totalorder %s27, 1
      %s327 = scalar_select %p326, %s27, 1
      %s328 = smul.addr %s327, 8
      %s329 = scalar_lea.vmem %s1, %s328
      %p330 = scmp.lt.s32.totalorder %s27, 1
      %s331 = scalar_select %p330, %s27, 1
      %s332 = scalar_lea.vmem %s10, %s331
      %v334 = vld [vmem:[%s329] sm:$0xff]
      %v335 = vlaneseq
      %v336 = vshrl.u32 %v335, 7
      %v337 = vlaneseq
      %v338 = vand.u32 %v337, 127
      %vm339 = vcmp.le.s32.totalorder %v338, %v336
      %v340 = vmul.f32 %v334, %v334
      %vm341 = vcmask 261120
      %v342 = vsel %vm341, %v340, 0.0
      %343 = vadd.xlane.f32.xlu0 %v342
      %v344 = vpop.xlane.xlu0 %343
      %v345 = vrcp.pop 32.0
      %v346 = vmul.f32 %v344, %v345
      %v347 = vadd.f32 %v346, 1e-06
      %v348 = vrsqrt.pop %v347
      %v349 = vmul.f32 %v334, %v348
      %v350 = vld [vmem:[%s2] sm:$0x1]
      %v352 = vlaneseq
      %v353 = vshrl.u32 %v352, 7
      %v354 = vsub.s32 0, %v353
      %v355 = vrot.slane %v350, %v354
      %v357 = vmul.f32 %v349, %v355
      %v358 = vpack.c.bf16 %v357, %v357
      %v359 = vld [vmem:[%s3] sm:$0xf]
      %v360 = vld [vmem:[%s3 + $0x4] sm:$0xf]
      %v361 = vld [vmem:[%s3 + $0x8] sm:$0xf]
      %v362 = vld [vmem:[%s3 + $0xc] sm:$0xf]
      %v367 = vunpack.c.l.b16 %v359
      %v368 = vunpack.c.l.b16 %v360
      %v369 = vunpack.c.l.b16 %v361
      %v370 = vunpack.c.l.b16 %v362
      %v371 = vpack.c.b16 %v368, %v367
      %v372 = vpack.c.b16 %v370, %v369
      %v376 = vsel %vm341, %v358, 0
      %378 = vmatprep.subr.bf16.mxu0 0
      %379 = vmatpush1.bf16.msra.mxu0 %v371
      %380 = vmatprep.subr.bf16.mxu0 0
      %381 = vmatpush1.bf16.msra.mxu0 %v372
      %382 = vmatprep.subr.bf16.mxu0 0
      %383 = vmatpush1.bf16.msra.mxu0 0
      %384 = vmatprep.subr.bf16.mxu0 0
      %385 = vmatpush1.bf16.msra.mxu0 0
      %386 = vmatprep.subr.bf16.mxu0 0
      %387 = vmatpush1.bf16.msra.mxu0 0
      %388 = vmatprep.subr.bf16.mxu0 0
      %389 = vmatpush1.bf16.msra.mxu0 0
      %390 = vmatprep.subr.bf16.mxu0 0
      %391 = vmatpush1.bf16.msra.mxu0 0
      %392 = vmatprep.subr.bf16.mxu0 0
      %393 = vmatpush1.bf16.msra.mxu0 0
      %394 = vmatprep.subr.bf16.mxu0 0
      %395 = vmatpush1.bf16.msra.mxu0 0
      %396 = vmatprep.subr.bf16.mxu0 0
      %397 = vmatpush1.bf16.msra.mxu0 0
      %398 = vmatprep.subr.bf16.mxu0 0
      %399 = vmatpush1.bf16.msra.mxu0 0
      %400 = vmatprep.subr.bf16.mxu0 0
      %401 = vmatpush1.bf16.msra.mxu0 0
      %402 = vmatprep.subr.bf16.mxu0 0
      %403 = vmatpush1.bf16.msra.mxu0 0
      %404 = vmatprep.subr.bf16.mxu0 0
      %405 = vmatpush1.bf16.msra.mxu0 0
      %406 = vmatprep.subr.bf16.mxu0 0
      %407 = vmatpush1.bf16.msra.mxu0 0
      %408 = vmatprep.subr.bf16.mxu0 0
      %409 = vmatpush1.bf16.msra.mxu0 0
      %410 = vmatprep.mubr.bf16.mxu0 0
      %411 = vmatmul.mubr.bf16.gmra.mrb[0].mxu0 %v376
      %v412 = vpop.f32.mrb[0].mxu0
      %v413 = vadd.f32 0.0, %v412
      %v414 = vpop.f32.mrb[0].mxu0
      %v415 = vpop.f32.mrb[0].mxu0
      %v416 = vpop.f32.mrb[0].mxu0
      %417 = vdwg.mxu0
      %v418 = vpack.c.bf16 %v413, %v413
      %420 = vrot.lane.b32.xlu0 %v418, 120
      %v421 = vpop.permute.xlu0 %420
      %422 = vrot.lane.b32.xlu0 %v418, 112
      %v423 = vpop.permute.xlu0 %422
      %424 = vrot.lane.b32.xlu0 %v418, 104
      %v425 = vpop.permute.xlu0 %424
      %426 = vrot.lane.b32.xlu0 %v418, 96
      %v427 = vpop.permute.xlu0 %426
      %vm428 = vcmask 64512
      %v430 = vsel %vm428, %v418, 0
      %v433 = vsel %vm428, %v427, 0
      %435 = vmatprep.subr.bf16.mxu0 0
      %436 = vmatpush1.bf16.xpose.msra.mxu0 %v433
      %437 = vmatprep.subr.bf16.mxu0 0
      %438 = vmatpush1.bf16.xpose.msra.mxu0 0
      %439 = vmatprep.subr.bf16.mxu0 0
      %440 = vmatpush1.bf16.xpose.msra.mxu0 0
      %441 = vmatprep.subr.bf16.mxu0 0
      %442 = vmatpush1.bf16.xpose.msra.mxu0 0
      %443 = vmatprep.subr.bf16.mxu0 0
      %444 = vmatpush1.bf16.xpose.msra.mxu0 0
      %445 = vmatprep.subr.bf16.mxu0 0
      %446 = vmatpush1.bf16.xpose.msra.mxu0 0
      %447 = vmatprep.subr.bf16.mxu0 0
      %448 = vmatpush1.bf16.xpose.msra.mxu0 0
      %449 = vmatprep.subr.bf16.mxu0 0
      %450 = vmatpush1.bf16.xpose.msra.mxu0 0
      %451 = vmatprep.subr.bf16.mxu0 0
      %452 = vmatpush1.bf16.xpose.msra.mxu0 0
      %453 = vmatprep.subr.bf16.mxu0 0
      %454 = vmatpush1.bf16.xpose.msra.mxu0 0
      %455 = vmatprep.subr.bf16.mxu0 0
      %456 = vmatpush1.bf16.xpose.msra.mxu0 0
      %457 = vmatprep.subr.bf16.mxu0 0
      %458 = vmatpush1.bf16.xpose.msra.mxu0 0
      %459 = vmatprep.subr.bf16.mxu0 0
      %460 = vmatpush1.bf16.xpose.msra.mxu0 0
      %461 = vmatprep.subr.bf16.mxu0 0
      %462 = vmatpush1.bf16.xpose.msra.mxu0 0
      %463 = vmatprep.subr.bf16.mxu0 0
      %464 = vmatpush1.bf16.xpose.msra.mxu0 0
      %465 = vmatprep.subr.bf16.mxu0 0
      %466 = vmatpush1.bf16.xpose.msra.mxu0 0
      %467 = vmatprep.mubr.bf16.mxu0 0
      %468 = vmatmul.mubr.bf16.gmra.mrb[0].mxu0 %v430
      %v469 = vpop.f32.mrb[0].mxu0
      %v470 = vadd.f32 0.0, %v469
      %v471 = vpop.f32.mrb[0].mxu0
      %v472 = vpop.f32.mrb[0].mxu0
      %v473 = vpop.f32.mrb[0].mxu0
      %474 = vdwg.mxu0
      %475 = vrot.lane.b32.xlu0 %v421, 96
      %v476 = vpop.permute.xlu0 %475
      %v478 = vsel %vm428, %v421, 0
      %v481 = vsel %vm428, %v476, 0
      %483 = vmatprep.subr.bf16.mxu0 0
      %484 = vmatpush1.bf16.xpose.msra.mxu0 %v481
      %485 = vmatprep.subr.bf16.mxu0 0
      %486 = vmatpush1.bf16.xpose.msra.mxu0 0
      %487 = vmatprep.subr.bf16.mxu0 0
      %488 = vmatpush1.bf16.xpose.msra.mxu0 0
      %489 = vmatprep.subr.bf16.mxu0 0
      %490 = vmatpush1.bf16.xpose.msra.mxu0 0
      %491 = vmatprep.subr.bf16.mxu0 0
      %492 = vmatpush1.bf16.xpose.msra.mxu0 0
      %493 = vmatprep.subr.bf16.mxu0 0
      %494 = vmatpush1.bf16.xpose.msra.mxu0 0
      %495 = vmatprep.subr.bf16.mxu0 0
      %496 = vmatpush1.bf16.xpose.msra.mxu0 0
      %497 = vmatprep.subr.bf16.mxu0 0
      %498 = vmatpush1.bf16.xpose.msra.mxu0 0
      %499 = vmatprep.subr.bf16.mxu0 0
      %500 = vmatpush1.bf16.xpose.msra.mxu0 0
      %501 = vmatprep.subr.bf16.mxu0 0
      %502 = vmatpush1.bf16.xpose.msra.mxu0 0
      %503 = vmatprep.subr.bf16.mxu0 0
      %504 = vmatpush1.bf16.xpose.msra.mxu0 0
      %505 = vmatprep.subr.bf16.mxu0 0
      %506 = vmatpush1.bf16.xpose.msra.mxu0 0
      %507 = vmatprep.subr.bf16.mxu0 0
      %508 = vmatpush1.bf16.xpose.msra.mxu0 0
      %509 = vmatprep.subr.bf16.mxu0 0
      %510 = vmatpush1.bf16.xpose.msra.mxu0 0
      %511 = vmatprep.subr.bf16.mxu0 0
      %512 = vmatpush1.bf16.xpose.msra.mxu0 0
      %513 = vmatprep.subr.bf16.mxu0 0
      %514 = vmatpush1.bf16.xpose.msra.mxu0 0
      %515 = vmatprep.mubr.bf16.mxu0 0
      %516 = vmatmul.mubr.bf16.gmra.mrb[0].mxu0 %v478
      %v517 = vpop.f32.mrb[0].mxu0
      %v518 = vadd.f32 0.0, %v517
      %v519 = vpop.f32.mrb[0].mxu0
      %v520 = vpop.f32.mrb[0].mxu0
      %v521 = vpop.f32.mrb[0].mxu0
      %522 = vdwg.mxu0
      %523 = vrot.lane.b32.xlu0 %v423, 96
      %v524 = vpop.permute.xlu0 %523
      %v526 = vsel %vm428, %v423, 0
      %v529 = vsel %vm428, %v524, 0
      %531 = vmatprep.subr.bf16.mxu0 0
      %532 = vmatpush1.bf16.xpose.msra.mxu0 %v529
      %533 = vmatprep.subr.bf16.mxu0 0
      %534 = vmatpush1.bf16.xpose.msra.mxu0 0
      %535 = vmatprep.subr.bf16.mxu0 0
      %536 = vmatpush1.bf16.xpose.msra.mxu0 0
      %537 = vmatprep.subr.bf16.mxu0 0
      %538 = vmatpush1.bf16.xpose.msra.mxu0 0
      %539 = vmatprep.subr.bf16.mxu0 0
      %540 = vmatpush1.bf16.xpose.msra.mxu0 0
      %541 = vmatprep.subr.bf16.mxu0 0
      %542 = vmatpush1.bf16.xpose.msra.mxu0 0
      %543 = vmatprep.subr.bf16.mxu0 0
      %544 = vmatpush1.bf16.xpose.msra.mxu0 0
      %545 = vmatprep.subr.bf16.mxu0 0
      %546 = vmatpush1.bf16.xpose.msra.mxu0 0
      %547 = vmatprep.subr.bf16.mxu0 0
      %548 = vmatpush1.bf16.xpose.msra.mxu0 0
      %549 = vmatprep.subr.bf16.mxu0 0
      %550 = vmatpush1.bf16.xpose.msra.mxu0 0
      %551 = vmatprep.subr.bf16.mxu0 0
      %552 = vmatpush1.bf16.xpose.msra.mxu0 0
      %553 = vmatprep.subr.bf16.mxu0 0
      %554 = vmatpush1.bf16.xpose.msra.mxu0 0
      %555 = vmatprep.subr.bf16.mxu0 0
      %556 = vmatpush1.bf16.xpose.msra.mxu0 0
      %557 = vmatprep.subr.bf16.mxu0 0
      %558 = vmatpush1.bf16.xpose.msra.mxu0 0
      %559 = vmatprep.subr.bf16.mxu0 0
      %560 = vmatpush1.bf16.xpose.msra.mxu0 0
      %561 = vmatprep.subr.bf16.mxu0 0
      %562 = vmatpush1.bf16.xpose.msra.mxu0 0
      %563 = vmatprep.mubr.bf16.mxu0 0
      %564 = vmatmul.mubr.bf16.gmra.mrb[0].mxu0 %v526
      %v565 = vpop.f32.mrb[0].mxu0
      %v566 = vadd.f32 0.0, %v565
      %v567 = vpop.f32.mrb[0].mxu0
      %v568 = vpop.f32.mrb[0].mxu0
      %v569 = vpop.f32.mrb[0].mxu0
      %570 = vdwg.mxu0
      %571 = vrot.lane.b32.xlu0 %v425, 96
      %v572 = vpop.permute.xlu0 %571
      %v574 = vsel %vm428, %v425, 0
      %v577 = vsel %vm428, %v572, 0
      %579 = vmatprep.subr.bf16.mxu0 0
      %580 = vmatpush1.bf16.xpose.msra.mxu0 %v577
      %581 = vmatprep.subr.bf16.mxu0 0
      %582 = vmatpush1.bf16.xpose.msra.mxu0 0
      %583 = vmatprep.subr.bf16.mxu0 0
      %584 = vmatpush1.bf16.xpose.msra.mxu0 0
      %585 = vmatprep.subr.bf16.mxu0 0
      %586 = vmatpush1.bf16.xpose.msra.mxu0 0
      %587 = vmatprep.subr.bf16.mxu0 0
      %588 = vmatpush1.bf16.xpose.msra.mxu0 0
      %589 = vmatprep.subr.bf16.mxu0 0
      %590 = vmatpush1.bf16.xpose.msra.mxu0 0
      %591 = vmatprep.subr.bf16.mxu0 0
      %592 = vmatpush1.bf16.xpose.msra.mxu0 0
      %593 = vmatprep.subr.bf16.mxu0 0
      %594 = vmatpush1.bf16.xpose.msra.mxu0 0
      %595 = vmatprep.subr.bf16.mxu0 0
      %596 = vmatpush1.bf16.xpose.msra.mxu0 0
      %597 = vmatprep.subr.bf16.mxu0 0
      %598 = vmatpush1.bf16.xpose.msra.mxu0 0
      %599 = vmatprep.subr.bf16.mxu0 0
      %600 = vmatpush1.bf16.xpose.msra.mxu0 0
      %601 = vmatprep.subr.bf16.mxu0 0
      %602 = vmatpush1.bf16.xpose.msra.mxu0 0
      %603 = vmatprep.subr.bf16.mxu0 0
      %604 = vmatpush1.bf16.xpose.msra.mxu0 0
      %605 = vmatprep.subr.bf16.mxu0 0
      %606 = vmatpush1.bf16.xpose.msra.mxu0 0
      %607 = vmatprep.subr.bf16.mxu0 0
      %608 = vmatpush1.bf16.xpose.msra.mxu0 0
      %609 = vmatprep.subr.bf16.mxu0 0
      %610 = vmatpush1.bf16.xpose.msra.mxu0 0
      %611 = vmatprep.mubr.bf16.mxu0 0
      %612 = vmatmul.mubr.bf16.gmra.mrb[0].mxu0 %v574
      %v613 = vpop.f32.mrb[0].mxu0
      %v614 = vadd.f32 0.0, %v613
      %v615 = vpop.f32.mrb[0].mxu0
      %v616 = vpop.f32.mrb[0].mxu0
      %v617 = vpop.f32.mrb[0].mxu0
      %618 = vdwg.mxu0
      %v619 = vmul.f32 %v470, 0.35355338
      %v620 = vmul.f32 %v518, 0.35355338
      %v621 = vmul.f32 %v566, 0.35355338
      %v622 = vmul.f32 %v614, 0.35355338
      %v623 = vsel %vm339, 1, 0
      %vm624 = vcmp.eq.s32.totalorder %v623, 1
      %v625 = vsel %vm624, %v619, -1e+30
      %v626 = vsel %vm624, %v620, -1e+30
      %v627 = vsel %vm624, %v621, -1e+30
      %v628 = vsel %vm624, %v622, -1e+30
      %v629 = vsel %vm428, %v625, -inf
      %630 = vmax.xlane.f32.xlu0 %v629
      %v631 = vpop.xlane.xlu0 %630
      %v632 = vsel %vm428, %v626, -inf
      %633 = vmax.xlane.f32.xlu0 %v632
      %v634 = vpop.xlane.xlu0 %633
      %v635 = vsel %vm428, %v627, -inf
      %636 = vmax.xlane.f32.xlu0 %v635
      %v637 = vpop.xlane.xlu0 %636
      %v638 = vsel %vm428, %v628, -inf
      %639 = vmax.xlane.f32.xlu0 %v638
      %v640 = vpop.xlane.xlu0 %639
      %v641 = vsub.f32 %v625, %v631
      %v642 = vsub.f32 %v626, %v634
      %v643 = vsub.f32 %v627, %v637
      %v644 = vsub.f32 %v628, %v640
      %v645 = vmul.f32 %v641, 1.442695
      %v646 = vpow.pop %v645
      %v647 = vmul.f32 %v642, 1.442695
      %v648 = vpow.pop %v647
      %v649 = vmul.f32 %v643, 1.442695
      %v650 = vpow.pop %v649
      %v651 = vmul.f32 %v644, 1.442695
      %v652 = vpow.pop %v651
      %v653 = vsel %vm428, %v646, 0.0
      %654 = vadd.xlane.f32.xlu0 %v653
      %v655 = vpop.xlane.xlu0 %654
      %v656 = vsel %vm428, %v648, 0.0
      %657 = vadd.xlane.f32.xlu0 %v656
      %v658 = vpop.xlane.xlu0 %657
      %v659 = vsel %vm428, %v650, 0.0
      %660 = vadd.xlane.f32.xlu0 %v659
      %v661 = vpop.xlane.xlu0 %660
      %v662 = vsel %vm428, %v652, 0.0
      %663 = vadd.xlane.f32.xlu0 %v662
      %v664 = vpop.xlane.xlu0 %663
      %v665 = vpack.c.bf16 %v646, %v646
      %v666 = vpack.c.bf16 %v648, %v648
      %v667 = vpack.c.bf16 %v650, %v650
      %v668 = vpack.c.bf16 %v652, %v652
      %669 = vrot.lane.b32.xlu0 %v418, 64
      %v670 = vpop.permute.xlu0 %669
      %v672 = vsel %vm428, %v665, 0
      %vm674 = vcmask 1043456
      %v676 = vsel %vm674, %v670, 0
      %678 = vmatprep.subr.bf16.mxu0 0
      %679 = vmatpush1.bf16.msra.mxu0 %v676
      %680 = vmatprep.subr.bf16.mxu0 0
      %681 = vmatpush1.bf16.msra.mxu0 0
      %682 = vmatprep.subr.bf16.mxu0 0
      %683 = vmatpush1.bf16.msra.mxu0 0
      %684 = vmatprep.subr.bf16.mxu0 0
      %685 = vmatpush1.bf16.msra.mxu0 0
      %686 = vmatprep.subr.bf16.mxu0 0
      %687 = vmatpush1.bf16.msra.mxu0 0
      %688 = vmatprep.subr.bf16.mxu0 0
      %689 = vmatpush1.bf16.msra.mxu0 0
      %690 = vmatprep.subr.bf16.mxu0 0
      %691 = vmatpush1.bf16.msra.mxu0 0
      %692 = vmatprep.subr.bf16.mxu0 0
      %693 = vmatpush1.bf16.msra.mxu0 0
      %694 = vmatprep.subr.bf16.mxu0 0
      %695 = vmatpush1.bf16.msra.mxu0 0
      %696 = vmatprep.subr.bf16.mxu0 0
      %697 = vmatpush1.bf16.msra.mxu0 0
      %698 = vmatprep.subr.bf16.mxu0 0
      %699 = vmatpush1.bf16.msra.mxu0 0
      %700 = vmatprep.subr.bf16.mxu0 0
      %701 = vmatpush1.bf16.msra.mxu0 0
      %702 = vmatprep.subr.bf16.mxu0 0
      %703 = vmatpush1.bf16.msra.mxu0 0
      %704 = vmatprep.subr.bf16.mxu0 0
      %705 = vmatpush1.bf16.msra.mxu0 0
      %706 = vmatprep.subr.bf16.mxu0 0
      %707 = vmatpush1.bf16.msra.mxu0 0
      %708 = vmatprep.subr.bf16.mxu0 0
      %709 = vmatpush1.bf16.msra.mxu0 0
      %710 = vmatprep.mubr.bf16.mxu0 0
      %711 = vmatmul.mubr.bf16.gmra.mrb[0].mxu0 %v672
      %v712 = vpop.f32.mrb[0].mxu0
      %v713 = vadd.f32 0.0, %v712
      %v714 = vpop.f32.mrb[0].mxu0
      %v715 = vpop.f32.mrb[0].mxu0
      %v716 = vpop.f32.mrb[0].mxu0
      %717 = vdwg.mxu0
      %718 = vrot.lane.b32.xlu0 %v421, 64
      %v719 = vpop.permute.xlu0 %718
      %v721 = vsel %vm428, %v666, 0
      %v724 = vsel %vm674, %v719, 0
      %726 = vmatprep.subr.bf16.mxu0 0
      %727 = vmatpush1.bf16.msra.mxu0 %v724
      %728 = vmatprep.subr.bf16.mxu0 0
      %729 = vmatpush1.bf16.msra.mxu0 0
      %730 = vmatprep.subr.bf16.mxu0 0
      %731 = vmatpush1.bf16.msra.mxu0 0
      %732 = vmatprep.subr.bf16.mxu0 0
      %733 = vmatpush1.bf16.msra.mxu0 0
      %734 = vmatprep.subr.bf16.mxu0 0
      %735 = vmatpush1.bf16.msra.mxu0 0
      %736 = vmatprep.subr.bf16.mxu0 0
      %737 = vmatpush1.bf16.msra.mxu0 0
      %738 = vmatprep.subr.bf16.mxu0 0
      %739 = vmatpush1.bf16.msra.mxu0 0
      %740 = vmatprep.subr.bf16.mxu0 0
      %741 = vmatpush1.bf16.msra.mxu0 0
      %742 = vmatprep.subr.bf16.mxu0 0
      %743 = vmatpush1.bf16.msra.mxu0 0
      %744 = vmatprep.subr.bf16.mxu0 0
      %745 = vmatpush1.bf16.msra.mxu0 0
      %746 = vmatprep.subr.bf16.mxu0 0
      %747 = vmatpush1.bf16.msra.mxu0 0
      %748 = vmatprep.subr.bf16.mxu0 0
      %749 = vmatpush1.bf16.msra.mxu0 0
      %750 = vmatprep.subr.bf16.mxu0 0
      %751 = vmatpush1.bf16.msra.mxu0 0
      %752 = vmatprep.subr.bf16.mxu0 0
      %753 = vmatpush1.bf16.msra.mxu0 0
      %754 = vmatprep.subr.bf16.mxu0 0
      %755 = vmatpush1.bf16.msra.mxu0 0
      %756 = vmatprep.subr.bf16.mxu0 0
      %757 = vmatpush1.bf16.msra.mxu0 0
      %758 = vmatprep.mubr.bf16.mxu0 0
      %759 = vmatmul.mubr.bf16.gmra.mrb[0].mxu0 %v721
      %v760 = vpop.f32.mrb[0].mxu0
      %v761 = vadd.f32 0.0, %v760
      %v762 = vpop.f32.mrb[0].mxu0
      %v763 = vpop.f32.mrb[0].mxu0
      %v764 = vpop.f32.mrb[0].mxu0
      %765 = vdwg.mxu0
      %766 = vrot.lane.b32.xlu0 %v423, 64
      %v767 = vpop.permute.xlu0 %766
      %v769 = vsel %vm428, %v667, 0
      %v772 = vsel %vm674, %v767, 0
      %774 = vmatprep.subr.bf16.mxu0 0
      %775 = vmatpush1.bf16.msra.mxu0 %v772
      %776 = vmatprep.subr.bf16.mxu0 0
      %777 = vmatpush1.bf16.msra.mxu0 0
      %778 = vmatprep.subr.bf16.mxu0 0
      %779 = vmatpush1.bf16.msra.mxu0 0
      %780 = vmatprep.subr.bf16.mxu0 0
      %781 = vmatpush1.bf16.msra.mxu0 0
      %782 = vmatprep.subr.bf16.mxu0 0
      %783 = vmatpush1.bf16.msra.mxu0 0
      %784 = vmatprep.subr.bf16.mxu0 0
      %785 = vmatpush1.bf16.msra.mxu0 0
      %786 = vmatprep.subr.bf16.mxu0 0
      %787 = vmatpush1.bf16.msra.mxu0 0
      %788 = vmatprep.subr.bf16.mxu0 0
      %789 = vmatpush1.bf16.msra.mxu0 0
      %790 = vmatprep.subr.bf16.mxu0 0
      %791 = vmatpush1.bf16.msra.mxu0 0
      %792 = vmatprep.subr.bf16.mxu0 0
      %793 = vmatpush1.bf16.msra.mxu0 0
      %794 = vmatprep.subr.bf16.mxu0 0
      %795 = vmatpush1.bf16.msra.mxu0 0
      %796 = vmatprep.subr.bf16.mxu0 0
      %797 = vmatpush1.bf16.msra.mxu0 0
      %798 = vmatprep.subr.bf16.mxu0 0
      %799 = vmatpush1.bf16.msra.mxu0 0
      %800 = vmatprep.subr.bf16.mxu0 0
      %801 = vmatpush1.bf16.msra.mxu0 0
      %802 = vmatprep.subr.bf16.mxu0 0
      %803 = vmatpush1.bf16.msra.mxu0 0
      %804 = vmatprep.subr.bf16.mxu0 0
      %805 = vmatpush1.bf16.msra.mxu0 0
      %806 = vmatprep.mubr.bf16.mxu0 0
      %807 = vmatmul.mubr.bf16.gmra.mrb[0].mxu0 %v769
      %v808 = vpop.f32.mrb[0].mxu0
      %v809 = vadd.f32 0.0, %v808
      %v810 = vpop.f32.mrb[0].mxu0
      %v811 = vpop.f32.mrb[0].mxu0
      %v812 = vpop.f32.mrb[0].mxu0
      %813 = vdwg.mxu0
      %814 = vrot.lane.b32.xlu0 %v425, 64
      %v815 = vpop.permute.xlu0 %814
      %v817 = vsel %vm428, %v668, 0
      %v820 = vsel %vm674, %v815, 0
      %822 = vmatprep.subr.bf16.mxu0 0
      %823 = vmatpush1.bf16.msra.mxu0 %v820
      %824 = vmatprep.subr.bf16.mxu0 0
      %825 = vmatpush1.bf16.msra.mxu0 0
      %826 = vmatprep.subr.bf16.mxu0 0
      %827 = vmatpush1.bf16.msra.mxu0 0
      %828 = vmatprep.subr.bf16.mxu0 0
      %829 = vmatpush1.bf16.msra.mxu0 0
      %830 = vmatprep.subr.bf16.mxu0 0
      %831 = vmatpush1.bf16.msra.mxu0 0
      %832 = vmatprep.subr.bf16.mxu0 0
      %833 = vmatpush1.bf16.msra.mxu0 0
      %834 = vmatprep.subr.bf16.mxu0 0
      %835 = vmatpush1.bf16.msra.mxu0 0
      %836 = vmatprep.subr.bf16.mxu0 0
      %837 = vmatpush1.bf16.msra.mxu0 0
      %838 = vmatprep.subr.bf16.mxu0 0
      %839 = vmatpush1.bf16.msra.mxu0 0
      %840 = vmatprep.subr.bf16.mxu0 0
      %841 = vmatpush1.bf16.msra.mxu0 0
      %842 = vmatprep.subr.bf16.mxu0 0
      %843 = vmatpush1.bf16.msra.mxu0 0
      %844 = vmatprep.subr.bf16.mxu0 0
      %845 = vmatpush1.bf16.msra.mxu0 0
      %846 = vmatprep.subr.bf16.mxu0 0
      %847 = vmatpush1.bf16.msra.mxu0 0
      %848 = vmatprep.subr.bf16.mxu0 0
      %849 = vmatpush1.bf16.msra.mxu0 0
      %850 = vmatprep.subr.bf16.mxu0 0
      %851 = vmatpush1.bf16.msra.mxu0 0
      %852 = vmatprep.subr.bf16.mxu0 0
      %853 = vmatpush1.bf16.msra.mxu0 0
      %854 = vmatprep.mubr.bf16.mxu0 0
      %855 = vmatmul.mubr.bf16.gmra.mrb[0].mxu0 %v817
      %v856 = vpop.f32.mrb[0].mxu0
      %v857 = vadd.f32 0.0, %v856
      %v858 = vpop.f32.mrb[0].mxu0
      %v859 = vpop.f32.mrb[0].mxu0
      %v860 = vpop.f32.mrb[0].mxu0
      %861 = vdwg.mxu0
      %v862 = vrcp.pop %v655
      %v863 = vrcp.pop %v658
      %v864 = vrcp.pop %v661
      %v865 = vrcp.pop %v664
      %v866 = vmul.f32 %v713, %v862
      %v867 = vmul.f32 %v761, %v863
      %v868 = vmul.f32 %v809, %v864
      %v869 = vmul.f32 %v857, %v865
      %v870 = vpack.c.bf16 %v866, %v866
      %v871 = vpack.c.bf16 %v867, %v867
      %v872 = vpack.c.bf16 %v868, %v868
      %v873 = vpack.c.bf16 %v869, %v869
      %v874 = vld [vmem:[%s4] sm:$0xf]
      %v875 = vld [vmem:[%s4 + $0x4] sm:$0xf]
      %v876 = vld [vmem:[%s4 + $0x8] sm:$0xf]
      %v877 = vld [vmem:[%s4 + $0xc] sm:$0xf]
      %v879 = vsel %vm428, %v870, 0
      %v882 = vsel %vm674, %v874, 0
      %884 = vmatprep.subr.bf16.mxu0 0
      %885 = vmatpush1.bf16.msra.mxu0 %v882
      %886 = vmatprep.subr.bf16.mxu0 0
      %887 = vmatpush1.bf16.msra.mxu0 0
      %888 = vmatprep.subr.bf16.mxu0 0
      %889 = vmatpush1.bf16.msra.mxu0 0
      %890 = vmatprep.subr.bf16.mxu0 0
      %891 = vmatpush1.bf16.msra.mxu0 0
      %892 = vmatprep.subr.bf16.mxu0 0
      %893 = vmatpush1.bf16.msra.mxu0 0
      %894 = vmatprep.subr.bf16.mxu0 0
      %895 = vmatpush1.bf16.msra.mxu0 0
      %896 = vmatprep.subr.bf16.mxu0 0
      %897 = vmatpush1.bf16.msra.mxu0 0
      %898 = vmatprep.subr.bf16.mxu0 0
      %899 = vmatpush1.bf16.msra.mxu0 0
      %900 = vmatprep.subr.bf16.mxu0 0
      %901 = vmatpush1.bf16.msra.mxu0 0
      %902 = vmatprep.subr.bf16.mxu0 0
      %903 = vmatpush1.bf16.msra.mxu0 0
      %904 = vmatprep.subr.bf16.mxu0 0
      %905 = vmatpush1.bf16.msra.mxu0 0
      %906 = vmatprep.subr.bf16.mxu0 0
      %907 = vmatpush1.bf16.msra.mxu0 0
      %908 = vmatprep.subr.bf16.mxu0 0
      %909 = vmatpush1.bf16.msra.mxu0 0
      %910 = vmatprep.subr.bf16.mxu0 0
      %911 = vmatpush1.bf16.msra.mxu0 0
      %912 = vmatprep.subr.bf16.mxu0 0
      %913 = vmatpush1.bf16.msra.mxu0 0
      %914 = vmatprep.subr.bf16.mxu0 0
      %915 = vmatpush1.bf16.msra.mxu0 0
      %916 = vmatprep.mubr.bf16.mxu0 0
      %917 = vmatmul.mubr.bf16.gmra.mrb[0].mxu0 %v879
      %v918 = vpop.f32.mrb[0].mxu0
      %v919 = vadd.f32 0.0, %v918
      %v920 = vpop.f32.mrb[0].mxu0
      %v921 = vpop.f32.mrb[0].mxu0
      %v922 = vpop.f32.mrb[0].mxu0
      %923 = vdwg.mxu0
      %v925 = vsel %vm428, %v871, 0
      %v928 = vsel %vm674, %v875, 0
      %930 = vmatprep.subr.bf16.mxu0 0
      %931 = vmatpush1.bf16.msra.mxu0 %v928
      %932 = vmatprep.subr.bf16.mxu0 0
      %933 = vmatpush1.bf16.msra.mxu0 0
      %934 = vmatprep.subr.bf16.mxu0 0
      %935 = vmatpush1.bf16.msra.mxu0 0
      %936 = vmatprep.subr.bf16.mxu0 0
      %937 = vmatpush1.bf16.msra.mxu0 0
      %938 = vmatprep.subr.bf16.mxu0 0
      %939 = vmatpush1.bf16.msra.mxu0 0
      %940 = vmatprep.subr.bf16.mxu0 0
      %941 = vmatpush1.bf16.msra.mxu0 0
      %942 = vmatprep.subr.bf16.mxu0 0
      %943 = vmatpush1.bf16.msra.mxu0 0
      %944 = vmatprep.subr.bf16.mxu0 0
      %945 = vmatpush1.bf16.msra.mxu0 0
      %946 = vmatprep.subr.bf16.mxu0 0
      %947 = vmatpush1.bf16.msra.mxu0 0
      %948 = vmatprep.subr.bf16.mxu0 0
      %949 = vmatpush1.bf16.msra.mxu0 0
      %950 = vmatprep.subr.bf16.mxu0 0
      %951 = vmatpush1.bf16.msra.mxu0 0
      %952 = vmatprep.subr.bf16.mxu0 0
      %953 = vmatpush1.bf16.msra.mxu0 0
      %954 = vmatprep.subr.bf16.mxu0 0
      %955 = vmatpush1.bf16.msra.mxu0 0
      %956 = vmatprep.subr.bf16.mxu0 0
      %957 = vmatpush1.bf16.msra.mxu0 0
      %958 = vmatprep.subr.bf16.mxu0 0
      %959 = vmatpush1.bf16.msra.mxu0 0
      %960 = vmatprep.subr.bf16.mxu0 0
      %961 = vmatpush1.bf16.msra.mxu0 0
      %962 = vmatprep.mubr.bf16.mxu0 0
      %963 = vmatmul.mubr.bf16.gmra.mrb[0].mxu0 %v925
      %v964 = vpop.f32.mrb[0].mxu0
      %v965 = vadd.f32 0.0, %v964
      %v966 = vpop.f32.mrb[0].mxu0
      %v967 = vpop.f32.mrb[0].mxu0
      %v968 = vpop.f32.mrb[0].mxu0
      %969 = vdwg.mxu0
      %v971 = vsel %vm428, %v872, 0
      %v974 = vsel %vm674, %v876, 0
      %976 = vmatprep.subr.bf16.mxu0 0
      %977 = vmatpush1.bf16.msra.mxu0 %v974
      %978 = vmatprep.subr.bf16.mxu0 0
      %979 = vmatpush1.bf16.msra.mxu0 0
      %980 = vmatprep.subr.bf16.mxu0 0
      %981 = vmatpush1.bf16.msra.mxu0 0
      %982 = vmatprep.subr.bf16.mxu0 0
      %983 = vmatpush1.bf16.msra.mxu0 0
      %984 = vmatprep.subr.bf16.mxu0 0
      %985 = vmatpush1.bf16.msra.mxu0 0
      %986 = vmatprep.subr.bf16.mxu0 0
      %987 = vmatpush1.bf16.msra.mxu0 0
      %988 = vmatprep.subr.bf16.mxu0 0
      %989 = vmatpush1.bf16.msra.mxu0 0
      %990 = vmatprep.subr.bf16.mxu0 0
      %991 = vmatpush1.bf16.msra.mxu0 0
      %992 = vmatprep.subr.bf16.mxu0 0
      %993 = vmatpush1.bf16.msra.mxu0 0
      %994 = vmatprep.subr.bf16.mxu0 0
      %995 = vmatpush1.bf16.msra.mxu0 0
      %996 = vmatprep.subr.bf16.mxu0 0
      %997 = vmatpush1.bf16.msra.mxu0 0
      %998 = vmatprep.subr.bf16.mxu0 0
      %999 = vmatpush1.bf16.msra.mxu0 0
      %1000 = vmatprep.subr.bf16.mxu0 0
      %1001 = vmatpush1.bf16.msra.mxu0 0
      %1002 = vmatprep.subr.bf16.mxu0 0
      %1003 = vmatpush1.bf16.msra.mxu0 0
      %1004 = vmatprep.subr.bf16.mxu0 0
      %1005 = vmatpush1.bf16.msra.mxu0 0
      %1006 = vmatprep.subr.bf16.mxu0 0
      %1007 = vmatpush1.bf16.msra.mxu0 0
      %1008 = vmatprep.mubr.bf16.mxu0 0
      %1009 = vmatmul.mubr.bf16.gmra.mrb[0].mxu0 %v971
      %v1010 = vpop.f32.mrb[0].mxu0
      %v1011 = vadd.f32 0.0, %v1010
      %v1012 = vpop.f32.mrb[0].mxu0
      %v1013 = vpop.f32.mrb[0].mxu0
      %v1014 = vpop.f32.mrb[0].mxu0
      %1015 = vdwg.mxu0
      %v1017 = vsel %vm428, %v873, 0
      %v1020 = vsel %vm674, %v877, 0
      %1022 = vmatprep.subr.bf16.mxu0 0
      %1023 = vmatpush1.bf16.msra.mxu0 %v1020
      %1024 = vmatprep.subr.bf16.mxu0 0
      %1025 = vmatpush1.bf16.msra.mxu0 0
      %1026 = vmatprep.subr.bf16.mxu0 0
      %1027 = vmatpush1.bf16.msra.mxu0 0
      %1028 = vmatprep.subr.bf16.mxu0 0
      %1029 = vmatpush1.bf16.msra.mxu0 0
      %1030 = vmatprep.subr.bf16.mxu0 0
      %1031 = vmatpush1.bf16.msra.mxu0 0
      %1032 = vmatprep.subr.bf16.mxu0 0
      %1033 = vmatpush1.bf16.msra.mxu0 0
      %1034 = vmatprep.subr.bf16.mxu0 0
      %1035 = vmatpush1.bf16.msra.mxu0 0
      %1036 = vmatprep.subr.bf16.mxu0 0
      %1037 = vmatpush1.bf16.msra.mxu0 0
      %1038 = vmatprep.subr.bf16.mxu0 0
      %1039 = vmatpush1.bf16.msra.mxu0 0
      %1040 = vmatprep.subr.bf16.mxu0 0
      %1041 = vmatpush1.bf16.msra.mxu0 0
      %1042 = vmatprep.subr.bf16.mxu0 0
      %1043 = vmatpush1.bf16.msra.mxu0 0
      %1044 = vmatprep.subr.bf16.mxu0 0
      %1045 = vmatpush1.bf16.msra.mxu0 0
      %1046 = vmatprep.subr.bf16.mxu0 0
      %1047 = vmatpush1.bf16.msra.mxu0 0
      %1048 = vmatprep.subr.bf16.mxu0 0
      %1049 = vmatpush1.bf16.msra.mxu0 0
      %1050 = vmatprep.subr.bf16.mxu0 0
      %1051 = vmatpush1.bf16.msra.mxu0 0
      %1052 = vmatprep.subr.bf16.mxu0 0
      %1053 = vmatpush1.bf16.msra.mxu0 0
      %1054 = vmatprep.mubr.bf16.mxu0 0
      %1055 = vmatmul.mubr.bf16.gmra.mrb[0].mxu0 %v1017
      %v1056 = vpop.f32.mrb[0].mxu0
      %v1057 = vadd.f32 0.0, %v1056
      %v1058 = vpop.f32.mrb[0].mxu0
      %v1059 = vpop.f32.mrb[0].mxu0
      %v1060 = vpop.f32.mrb[0].mxu0
      %1061 = vdwg.mxu0
      %v1062 = vsel %vm341, %v919, 0.0
      %v1063 = vsel %vm341, %v965, 0.0
      %v1064 = vadd.f32 %v1062, %v1063
      %v1065 = vsel %vm341, %v1011, 0.0
      %v1066 = vadd.f32 %v1064, %v1065
      %v1067 = vsel %vm341, %v1057, 0.0
      %v1068 = vadd.f32 %v1066, %v1067
      %v1069 = vadd.f32 %v334, %v1068
      %v1070 = vmul.f32 %v1069, %v1069
      %v1071 = vsel %vm341, %v1070, 0.0
      %1072 = vadd.xlane.f32.xlu0 %v1071
      %v1073 = vpop.xlane.xlu0 %1072
      %v1074 = vmul.f32 %v1073, %v345
      %v1075 = vadd.f32 %v1074, 1e-06
      %v1076 = vrsqrt.pop %v1075
      %v1077 = vmul.f32 %v1069, %v1076
      %v1078 = vld [vmem:[%s5] sm:$0x1]
      %v1080 = vlaneseq
      %v1081 = vshrl.u32 %v1080, 7
      %v1082 = vsub.s32 0, %v1081
      %v1083 = vrot.slane %v1078, %v1082
      %v1085 = vmul.f32 %v1077, %v1083
      %v1086 = vpack.c.bf16 %v1085, %v1085
      %v1087 = vld [vmem:[%s6] sm:$0xf]
      %v1088 = vld [vmem:[%s6 + $0x4] sm:$0xf]
      %v1089 = vld [vmem:[%s6 + $0x8] sm:$0xf]
      %v1090 = vld [vmem:[%s6 + $0xc] sm:$0xf]
      %v1095 = vunpack.c.l.b16 %v1087
      %v1096 = vunpack.c.l.b16 %v1088
      %v1097 = vunpack.c.l.b16 %v1089
      %v1098 = vunpack.c.l.b16 %v1090
      %v1099 = vpack.c.b16 %v1096, %v1095
      %v1100 = vpack.c.b16 %v1098, %v1097
      %v1104 = vsel %vm341, %v1086, 0
      %1106 = vmatprep.subr.bf16.mxu0 0
      %1107 = vmatpush1.bf16.msra.mxu0 %v1099
      %1108 = vmatprep.subr.bf16.mxu0 0
      %1109 = vmatpush1.bf16.msra.mxu0 %v1100
      %1110 = vmatprep.subr.bf16.mxu0 0
      %1111 = vmatpush1.bf16.msra.mxu0 0
      %1112 = vmatprep.subr.bf16.mxu0 0
      %1113 = vmatpush1.bf16.msra.mxu0 0
      %1114 = vmatprep.subr.bf16.mxu0 0
      %1115 = vmatpush1.bf16.msra.mxu0 0
      %1116 = vmatprep.subr.bf16.mxu0 0
      %1117 = vmatpush1.bf16.msra.mxu0 0
      %1118 = vmatprep.subr.bf16.mxu0 0
      %1119 = vmatpush1.bf16.msra.mxu0 0
      %1120 = vmatprep.subr.bf16.mxu0 0
      %1121 = vmatpush1.bf16.msra.mxu0 0
      %1122 = vmatprep.subr.bf16.mxu0 0
      %1123 = vmatpush1.bf16.msra.mxu0 0
      %1124 = vmatprep.subr.bf16.mxu0 0
      %1125 = vmatpush1.bf16.msra.mxu0 0
      %1126 = vmatprep.subr.bf16.mxu0 0
      %1127 = vmatpush1.bf16.msra.mxu0 0
      %1128 = vmatprep.subr.bf16.mxu0 0
      %1129 = vmatpush1.bf16.msra.mxu0 0
      %1130 = vmatprep.subr.bf16.mxu0 0
      %1131 = vmatpush1.bf16.msra.mxu0 0
      %1132 = vmatprep.subr.bf16.mxu0 0
      %1133 = vmatpush1.bf16.msra.mxu0 0
      %1134 = vmatprep.subr.bf16.mxu0 0
      %1135 = vmatpush1.bf16.msra.mxu0 0
      %1136 = vmatprep.subr.bf16.mxu0 0
      %1137 = vmatpush1.bf16.msra.mxu0 0
      %1138 = vmatprep.mubr.bf16.mxu0 0
      %1139 = vmatmul.mubr.bf16.gmra.mrb[0].mxu0 %v1104
      %v1140 = vpop.f32.mrb[0].mxu0
      %v1141 = vadd.f32 0.0, %v1140
      %v1142 = vpop.f32.mrb[0].mxu0
      %v1143 = vpop.f32.mrb[0].mxu0
      %v1144 = vpop.f32.mrb[0].mxu0
      %1145 = vdwg.mxu0
      %v1146 = vxor.u32 %v1141, 2147483648
      %v1147 = vmul.f32 %v1146, 1.442695
      %v1148 = vpow.pop %v1147
      %v1149 = vadd.f32 %v1148, 1.0
      %v1150 = vrcp.pop %v1149
      %v1151 = vmul.f32 1.0, %v1150
      %v1152 = vmul.f32 %v1141, %v1151
      %1154 = vrot.lane.b32.xlu0 %v1141, 64
      %v1155 = vpop.permute.xlu0 %1154
      %v1157 = vmul.f32 %v1152, %v1155
      %v1158 = vpack.c.bf16 %v1157, %v1157
      %v1159 = vld [vmem:[%s7] sm:$0xf]
      %v1160 = vld [vmem:[%s7 + $0x4] sm:$0xf]
      %v1161 = vld [vmem:[%s7 + $0x8] sm:$0xf]
      %v1162 = vld [vmem:[%s7 + $0xc] sm:$0xf]
      %v1163 = vld [vmem:[%s7 + $0x10] sm:$0xf]
      %v1164 = vld [vmem:[%s7 + $0x14] sm:$0xf]
      %v1165 = vld [vmem:[%s7 + $0x18] sm:$0xf]
      %v1166 = vld [vmem:[%s7 + $0x1c] sm:$0xf]
      %v1175 = vunpack.c.l.b16 %v1159
      %v1176 = vunpack.c.l.b16 %v1160
      %v1177 = vunpack.c.l.b16 %v1161
      %v1178 = vunpack.c.l.b16 %v1162
      %v1179 = vunpack.c.l.b16 %v1163
      %v1180 = vunpack.c.l.b16 %v1164
      %v1181 = vunpack.c.l.b16 %v1165
      %v1182 = vunpack.c.l.b16 %v1166
      %v1183 = vpack.c.b16 %v1176, %v1175
      %v1184 = vpack.c.b16 %v1178, %v1177
      %v1185 = vpack.c.b16 %v1180, %v1179
      %v1186 = vpack.c.b16 %v1182, %v1181
      %vm1191 = vcmask 523264
      %v1193 = vsel %vm1191, %v1158, 0
      %1195 = vmatprep.subr.bf16.mxu0 0
      %1196 = vmatpush1.bf16.msra.mxu0 %v1183
      %1197 = vmatprep.subr.bf16.mxu0 0
      %1198 = vmatpush1.bf16.msra.mxu0 %v1184
      %1199 = vmatprep.subr.bf16.mxu0 0
      %1200 = vmatpush1.bf16.msra.mxu0 %v1185
      %1201 = vmatprep.subr.bf16.mxu0 0
      %1202 = vmatpush1.bf16.msra.mxu0 %v1186
      %1203 = vmatprep.subr.bf16.mxu0 0
      %1204 = vmatpush1.bf16.msra.mxu0 0
      %1205 = vmatprep.subr.bf16.mxu0 0
      %1206 = vmatpush1.bf16.msra.mxu0 0
      %1207 = vmatprep.subr.bf16.mxu0 0
      %1208 = vmatpush1.bf16.msra.mxu0 0
      %1209 = vmatprep.subr.bf16.mxu0 0
      %1210 = vmatpush1.bf16.msra.mxu0 0
      %1211 = vmatprep.subr.bf16.mxu0 0
      %1212 = vmatpush1.bf16.msra.mxu0 0
      %1213 = vmatprep.subr.bf16.mxu0 0
      %1214 = vmatpush1.bf16.msra.mxu0 0
      %1215 = vmatprep.subr.bf16.mxu0 0
      %1216 = vmatpush1.bf16.msra.mxu0 0
      %1217 = vmatprep.subr.bf16.mxu0 0
      %1218 = vmatpush1.bf16.msra.mxu0 0
      %1219 = vmatprep.subr.bf16.mxu0 0
      %1220 = vmatpush1.bf16.msra.mxu0 0
      %1221 = vmatprep.subr.bf16.mxu0 0
      %1222 = vmatpush1.bf16.msra.mxu0 0
      %1223 = vmatprep.subr.bf16.mxu0 0
      %1224 = vmatpush1.bf16.msra.mxu0 0
      %1225 = vmatprep.subr.bf16.mxu0 0
      %1226 = vmatpush1.bf16.msra.mxu0 0
      %1227 = vmatprep.mubr.bf16.mxu0 0
      %1228 = vmatmul.mubr.bf16.gmra.mrb[0].mxu0 %v1193
      %v1229 = vpop.f32.mrb[0].mxu0
      %v1230 = vadd.f32 0.0, %v1229
      %v1231 = vpop.f32.mrb[0].mxu0
      %v1232 = vpop.f32.mrb[0].mxu0
      %v1233 = vpop.f32.mrb[0].mxu0
      %1234 = vdwg.mxu0
      %v1235 = vadd.f32 %v1069, %v1230
      %v1236 = vmul.f32 %v1235, %v1235
      %v1237 = vsel %vm341, %v1236, 0.0
      %1238 = vadd.xlane.f32.xlu0 %v1237
      %v1239 = vpop.xlane.xlu0 %1238
      %v1240 = vmul.f32 %v1239, %v345
      %v1241 = vadd.f32 %v1240, 1e-06
      %v1242 = vrsqrt.pop %v1241
      %v1243 = vmul.f32 %v1235, %v1242
      %s1244 = scalar_lea.vmem %s2, 1
      %v1245 = vld [vmem:[%s1244] sm:$0x1]
      %v1247 = vlaneseq
      %v1248 = vshrl.u32 %v1247, 7
      %v1249 = vsub.s32 0, %v1248
      %v1250 = vrot.slane %v1245, %v1249
      %v1252 = vmul.f32 %v1243, %v1250
      %v1253 = vpack.c.bf16 %v1252, %v1252
      %s1254 = scalar_lea.vmem %s3, 16
      %v1255 = vld [vmem:[%s1254] sm:$0xf]
      %v1256 = vld [vmem:[%s1254 + $0x4] sm:$0xf]
      %v1257 = vld [vmem:[%s1254 + $0x8] sm:$0xf]
      %v1258 = vld [vmem:[%s1254 + $0xc] sm:$0xf]
      %v1263 = vunpack.c.l.b16 %v1255
      %v1264 = vunpack.c.l.b16 %v1256
      %v1265 = vunpack.c.l.b16 %v1257
      %v1266 = vunpack.c.l.b16 %v1258
      %v1267 = vpack.c.b16 %v1264, %v1263
      %v1268 = vpack.c.b16 %v1266, %v1265
      %v1272 = vsel %vm341, %v1253, 0
      %1274 = vmatprep.subr.bf16.mxu0 0
      %1275 = vmatpush1.bf16.msra.mxu0 %v1267
      %1276 = vmatprep.subr.bf16.mxu0 0
      %1277 = vmatpush1.bf16.msra.mxu0 %v1268
      %1278 = vmatprep.subr.bf16.mxu0 0
      %1279 = vmatpush1.bf16.msra.mxu0 0
      %1280 = vmatprep.subr.bf16.mxu0 0
      %1281 = vmatpush1.bf16.msra.mxu0 0
      %1282 = vmatprep.subr.bf16.mxu0 0
      %1283 = vmatpush1.bf16.msra.mxu0 0
      %1284 = vmatprep.subr.bf16.mxu0 0
      %1285 = vmatpush1.bf16.msra.mxu0 0
      %1286 = vmatprep.subr.bf16.mxu0 0
      %1287 = vmatpush1.bf16.msra.mxu0 0
      %1288 = vmatprep.subr.bf16.mxu0 0
      %1289 = vmatpush1.bf16.msra.mxu0 0
      %1290 = vmatprep.subr.bf16.mxu0 0
      %1291 = vmatpush1.bf16.msra.mxu0 0
      %1292 = vmatprep.subr.bf16.mxu0 0
      %1293 = vmatpush1.bf16.msra.mxu0 0
      %1294 = vmatprep.subr.bf16.mxu0 0
      %1295 = vmatpush1.bf16.msra.mxu0 0
      %1296 = vmatprep.subr.bf16.mxu0 0
      %1297 = vmatpush1.bf16.msra.mxu0 0
      %1298 = vmatprep.subr.bf16.mxu0 0
      %1299 = vmatpush1.bf16.msra.mxu0 0
      %1300 = vmatprep.subr.bf16.mxu0 0
      %1301 = vmatpush1.bf16.msra.mxu0 0
      %1302 = vmatprep.subr.bf16.mxu0 0
      %1303 = vmatpush1.bf16.msra.mxu0 0
      %1304 = vmatprep.subr.bf16.mxu0 0
      %1305 = vmatpush1.bf16.msra.mxu0 0
      %1306 = vmatprep.mubr.bf16.mxu0 0
      %1307 = vmatmul.mubr.bf16.gmra.mrb[0].mxu0 %v1272
      %v1308 = vpop.f32.mrb[0].mxu0
      %v1309 = vadd.f32 0.0, %v1308
      %v1310 = vpop.f32.mrb[0].mxu0
      %v1311 = vpop.f32.mrb[0].mxu0
      %v1312 = vpop.f32.mrb[0].mxu0
      %1313 = vdwg.mxu0
      %v1314 = vpack.c.bf16 %v1309, %v1309
      %1316 = vrot.lane.b32.xlu0 %v1314, 120
      %v1317 = vpop.permute.xlu0 %1316
      %1318 = vrot.lane.b32.xlu0 %v1314, 112
      %v1319 = vpop.permute.xlu0 %1318
      %1320 = vrot.lane.b32.xlu0 %v1314, 104
      %v1321 = vpop.permute.xlu0 %1320
      %1322 = vrot.lane.b32.xlu0 %v1314, 96
      %v1323 = vpop.permute.xlu0 %1322
      %v1325 = vsel %vm428, %v1314, 0
      %v1328 = vsel %vm428, %v1323, 0
      %1330 = vmatprep.subr.bf16.mxu0 0
      %1331 = vmatpush1.bf16.xpose.msra.mxu0 %v1328
      %1332 = vmatprep.subr.bf16.mxu0 0
      %1333 = vmatpush1.bf16.xpose.msra.mxu0 0
      %1334 = vmatprep.subr.bf16.mxu0 0
      %1335 = vmatpush1.bf16.xpose.msra.mxu0 0
      %1336 = vmatprep.subr.bf16.mxu0 0
      %1337 = vmatpush1.bf16.xpose.msra.mxu0 0
      %1338 = vmatprep.subr.bf16.mxu0 0
      %1339 = vmatpush1.bf16.xpose.msra.mxu0 0
      %1340 = vmatprep.subr.bf16.mxu0 0
      %1341 = vmatpush1.bf16.xpose.msra.mxu0 0
      %1342 = vmatprep.subr.bf16.mxu0 0
      %1343 = vmatpush1.bf16.xpose.msra.mxu0 0
      %1344 = vmatprep.subr.bf16.mxu0 0
      %1345 = vmatpush1.bf16.xpose.msra.mxu0 0
      %1346 = vmatprep.subr.bf16.mxu0 0
      %1347 = vmatpush1.bf16.xpose.msra.mxu0 0
      %1348 = vmatprep.subr.bf16.mxu0 0
      %1349 = vmatpush1.bf16.xpose.msra.mxu0 0
      %1350 = vmatprep.subr.bf16.mxu0 0
      %1351 = vmatpush1.bf16.xpose.msra.mxu0 0
      %1352 = vmatprep.subr.bf16.mxu0 0
      %1353 = vmatpush1.bf16.xpose.msra.mxu0 0
      %1354 = vmatprep.subr.bf16.mxu0 0
      %1355 = vmatpush1.bf16.xpose.msra.mxu0 0
      %1356 = vmatprep.subr.bf16.mxu0 0
      %1357 = vmatpush1.bf16.xpose.msra.mxu0 0
      %1358 = vmatprep.subr.bf16.mxu0 0
      %1359 = vmatpush1.bf16.xpose.msra.mxu0 0
      %1360 = vmatprep.subr.bf16.mxu0 0
      %1361 = vmatpush1.bf16.xpose.msra.mxu0 0
      %1362 = vmatprep.mubr.bf16.mxu0 0
      %1363 = vmatmul.mubr.bf16.gmra.mrb[0].mxu0 %v1325
      %v1364 = vpop.f32.mrb[0].mxu0
      %v1365 = vadd.f32 0.0, %v1364
      %v1366 = vpop.f32.mrb[0].mxu0
      %v1367 = vpop.f32.mrb[0].mxu0
      %v1368 = vpop.f32.mrb[0].mxu0
      %1369 = vdwg.mxu0
      %1370 = vrot.lane.b32.xlu0 %v1317, 96
      %v1371 = vpop.permute.xlu0 %1370
      %v1373 = vsel %vm428, %v1317, 0
      %v1376 = vsel %vm428, %v1371, 0
      %1378 = vmatprep.subr.bf16.mxu0 0
      %1379 = vmatpush1.bf16.xpose.msra.mxu0 %v1376
      %1380 = vmatprep.subr.bf16.mxu0 0
      %1381 = vmatpush1.bf16.xpose.msra.mxu0 0
      %1382 = vmatprep.subr.bf16.mxu0 0
      %1383 = vmatpush1.bf16.xpose.msra.mxu0 0
      %1384 = vmatprep.subr.bf16.mxu0 0
      %1385 = vmatpush1.bf16.xpose.msra.mxu0 0
      %1386 = vmatprep.subr.bf16.mxu0 0
      %1387 = vmatpush1.bf16.xpose.msra.mxu0 0
      %1388 = vmatprep.subr.bf16.mxu0 0
      %1389 = vmatpush1.bf16.xpose.msra.mxu0 0
      %1390 = vmatprep.subr.bf16.mxu0 0
      %1391 = vmatpush1.bf16.xpose.msra.mxu0 0
      %1392 = vmatprep.subr.bf16.mxu0 0
      %1393 = vmatpush1.bf16.xpose.msra.mxu0 0
      %1394 = vmatprep.subr.bf16.mxu0 0
      %1395 = vmatpush1.bf16.xpose.msra.mxu0 0
      %1396 = vmatprep.subr.bf16.mxu0 0
      %1397 = vmatpush1.bf16.xpose.msra.mxu0 0
      %1398 = vmatprep.subr.bf16.mxu0 0
      %1399 = vmatpush1.bf16.xpose.msra.mxu0 0
      %1400 = vmatprep.subr.bf16.mxu0 0
      %1401 = vmatpush1.bf16.xpose.msra.mxu0 0
      %1402 = vmatprep.subr.bf16.mxu0 0
      %1403 = vmatpush1.bf16.xpose.msra.mxu0 0
      %1404 = vmatprep.subr.bf16.mxu0 0
      %1405 = vmatpush1.bf16.xpose.msra.mxu0 0
      %1406 = vmatprep.subr.bf16.mxu0 0
      %1407 = vmatpush1.bf16.xpose.msra.mxu0 0
      %1408 = vmatprep.subr.bf16.mxu0 0
      %1409 = vmatpush1.bf16.xpose.msra.mxu0 0
      %1410 = vmatprep.mubr.bf16.mxu0 0
      %1411 = vmatmul.mubr.bf16.gmra.mrb[0].mxu0 %v1373
      %v1412 = vpop.f32.mrb[0].mxu0
      %v1413 = vadd.f32 0.0, %v1412
      %v1414 = vpop.f32.mrb[0].mxu0
      %v1415 = vpop.f32.mrb[0].mxu0
      %v1416 = vpop.f32.mrb[0].mxu0
      %1417 = vdwg.mxu0
      %1418 = vrot.lane.b32.xlu0 %v1319, 96
      %v1419 = vpop.permute.xlu0 %1418
      %v1421 = vsel %vm428, %v1319, 0
      %v1424 = vsel %vm428, %v1419, 0
      %1426 = vmatprep.subr.bf16.mxu0 0
      %1427 = vmatpush1.bf16.xpose.msra.mxu0 %v1424
      %1428 = vmatprep.subr.bf16.mxu0 0
      %1429 = vmatpush1.bf16.xpose.msra.mxu0 0
      %1430 = vmatprep.subr.bf16.mxu0 0
      %1431 = vmatpush1.bf16.xpose.msra.mxu0 0
      %1432 = vmatprep.subr.bf16.mxu0 0
      %1433 = vmatpush1.bf16.xpose.msra.mxu0 0
      %1434 = vmatprep.subr.bf16.mxu0 0
      %1435 = vmatpush1.bf16.xpose.msra.mxu0 0
      %1436 = vmatprep.subr.bf16.mxu0 0
      %1437 = vmatpush1.bf16.xpose.msra.mxu0 0
      %1438 = vmatprep.subr.bf16.mxu0 0
      %1439 = vmatpush1.bf16.xpose.msra.mxu0 0
      %1440 = vmatprep.subr.bf16.mxu0 0
      %1441 = vmatpush1.bf16.xpose.msra.mxu0 0
      %1442 = vmatprep.subr.bf16.mxu0 0
      %1443 = vmatpush1.bf16.xpose.msra.mxu0 0
      %1444 = vmatprep.subr.bf16.mxu0 0
      %1445 = vmatpush1.bf16.xpose.msra.mxu0 0
      %1446 = vmatprep.subr.bf16.mxu0 0
      %1447 = vmatpush1.bf16.xpose.msra.mxu0 0
      %1448 = vmatprep.subr.bf16.mxu0 0
      %1449 = vmatpush1.bf16.xpose.msra.mxu0 0
      %1450 = vmatprep.subr.bf16.mxu0 0
      %1451 = vmatpush1.bf16.xpose.msra.mxu0 0
      %1452 = vmatprep.subr.bf16.mxu0 0
      %1453 = vmatpush1.bf16.xpose.msra.mxu0 0
      %1454 = vmatprep.subr.bf16.mxu0 0
      %1455 = vmatpush1.bf16.xpose.msra.mxu0 0
      %1456 = vmatprep.subr.bf16.mxu0 0
      %1457 = vmatpush1.bf16.xpose.msra.mxu0 0
      %1458 = vmatprep.mubr.bf16.mxu0 0
      %1459 = vmatmul.mubr.bf16.gmra.mrb[0].mxu0 %v1421
      %v1460 = vpop.f32.mrb[0].mxu0
      %v1461 = vadd.f32 0.0, %v1460
      %v1462 = vpop.f32.mrb[0].mxu0
      %v1463 = vpop.f32.mrb[0].mxu0
      %v1464 = vpop.f32.mrb[0].mxu0
      %1465 = vdwg.mxu0
      %1466 = vrot.lane.b32.xlu0 %v1321, 96
      %v1467 = vpop.permute.xlu0 %1466
      %v1469 = vsel %vm428, %v1321, 0
      %v1472 = vsel %vm428, %v1467, 0
      %1474 = vmatprep.subr.bf16.mxu0 0
      %1475 = vmatpush1.bf16.xpose.msra.mxu0 %v1472
      %1476 = vmatprep.subr.bf16.mxu0 0
      %1477 = vmatpush1.bf16.xpose.msra.mxu0 0
      %1478 = vmatprep.subr.bf16.mxu0 0
      %1479 = vmatpush1.bf16.xpose.msra.mxu0 0
      %1480 = vmatprep.subr.bf16.mxu0 0
      %1481 = vmatpush1.bf16.xpose.msra.mxu0 0
      %1482 = vmatprep.subr.bf16.mxu0 0
      %1483 = vmatpush1.bf16.xpose.msra.mxu0 0
      %1484 = vmatprep.subr.bf16.mxu0 0
      %1485 = vmatpush1.bf16.xpose.msra.mxu0 0
      %1486 = vmatprep.subr.bf16.mxu0 0
      %1487 = vmatpush1.bf16.xpose.msra.mxu0 0
      %1488 = vmatprep.subr.bf16.mxu0 0
      %1489 = vmatpush1.bf16.xpose.msra.mxu0 0
      %1490 = vmatprep.subr.bf16.mxu0 0
      %1491 = vmatpush1.bf16.xpose.msra.mxu0 0
      %1492 = vmatprep.subr.bf16.mxu0 0
      %1493 = vmatpush1.bf16.xpose.msra.mxu0 0
      %1494 = vmatprep.subr.bf16.mxu0 0
      %1495 = vmatpush1.bf16.xpose.msra.mxu0 0
      %1496 = vmatprep.subr.bf16.mxu0 0
      %1497 = vmatpush1.bf16.xpose.msra.mxu0 0
      %1498 = vmatprep.subr.bf16.mxu0 0
      %1499 = vmatpush1.bf16.xpose.msra.mxu0 0
      %1500 = vmatprep.subr.bf16.mxu0 0
      %1501 = vmatpush1.bf16.xpose.msra.mxu0 0
      %1502 = vmatprep.subr.bf16.mxu0 0
      %1503 = vmatpush1.bf16.xpose.msra.mxu0 0
      %1504 = vmatprep.subr.bf16.mxu0 0
      %1505 = vmatpush1.bf16.xpose.msra.mxu0 0
      %1506 = vmatprep.mubr.bf16.mxu0 0
      %1507 = vmatmul.mubr.bf16.gmra.mrb[0].mxu0 %v1469
      %v1508 = vpop.f32.mrb[0].mxu0
      %v1509 = vadd.f32 0.0, %v1508
      %v1510 = vpop.f32.mrb[0].mxu0
      %v1511 = vpop.f32.mrb[0].mxu0
      %v1512 = vpop.f32.mrb[0].mxu0
      %1513 = vdwg.mxu0
      %v1514 = vmul.f32 %v1365, 0.35355338
      %v1515 = vmul.f32 %v1413, 0.35355338
      %v1516 = vmul.f32 %v1461, 0.35355338
      %v1517 = vmul.f32 %v1509, 0.35355338
      %v1518 = vsel %vm624, %v1514, -1e+30
      %v1519 = vsel %vm624, %v1515, -1e+30
      %v1520 = vsel %vm624, %v1516, -1e+30
      %v1521 = vsel %vm624, %v1517, -1e+30
      %v1522 = vsel %vm428, %v1518, -inf
      %1523 = vmax.xlane.f32.xlu0 %v1522
      %v1524 = vpop.xlane.xlu0 %1523
      %v1525 = vsel %vm428, %v1519, -inf
      %1526 = vmax.xlane.f32.xlu0 %v1525
      %v1527 = vpop.xlane.xlu0 %1526
      %v1528 = vsel %vm428, %v1520, -inf
      %1529 = vmax.xlane.f32.xlu0 %v1528
      %v1530 = vpop.xlane.xlu0 %1529
      %v1531 = vsel %vm428, %v1521, -inf
      %1532 = vmax.xlane.f32.xlu0 %v1531
      %v1533 = vpop.xlane.xlu0 %1532
      %v1534 = vsub.f32 %v1518, %v1524
      %v1535 = vsub.f32 %v1519, %v1527
      %v1536 = vsub.f32 %v1520, %v1530
      %v1537 = vsub.f32 %v1521, %v1533
      %v1538 = vmul.f32 %v1534, 1.442695
      %v1539 = vpow.pop %v1538
      %v1540 = vmul.f32 %v1535, 1.442695
      %v1541 = vpow.pop %v1540
      %v1542 = vmul.f32 %v1536, 1.442695
      %v1543 = vpow.pop %v1542
      %v1544 = vmul.f32 %v1537, 1.442695
      %v1545 = vpow.pop %v1544
      %v1546 = vsel %vm428, %v1539, 0.0
      %1547 = vadd.xlane.f32.xlu0 %v1546
      %v1548 = vpop.xlane.xlu0 %1547
      %v1549 = vsel %vm428, %v1541, 0.0
      %1550 = vadd.xlane.f32.xlu0 %v1549
      %v1551 = vpop.xlane.xlu0 %1550
      %v1552 = vsel %vm428, %v1543, 0.0
      %1553 = vadd.xlane.f32.xlu0 %v1552
      %v1554 = vpop.xlane.xlu0 %1553
      %v1555 = vsel %vm428, %v1545, 0.0
      %1556 = vadd.xlane.f32.xlu0 %v1555
      %v1557 = vpop.xlane.xlu0 %1556
      %v1558 = vpack.c.bf16 %v1539, %v1539
      %v1559 = vpack.c.bf16 %v1541, %v1541
      %v1560 = vpack.c.bf16 %v1543, %v1543
      %v1561 = vpack.c.bf16 %v1545, %v1545
      %1562 = vrot.lane.b32.xlu0 %v1314, 64
      %v1563 = vpop.permute.xlu0 %1562
      %v1565 = vsel %vm428, %v1558, 0
      %v1568 = vsel %vm674, %v1563, 0
      %1570 = vmatprep.subr.bf16.mxu0 0
      %1571 = vmatpush1.bf16.msra.mxu0 %v1568
      %1572 = vmatprep.subr.bf16.mxu0 0
      %1573 = vmatpush1.bf16.msra.mxu0 0
      %1574 = vmatprep.subr.bf16.mxu0 0
      %1575 = vmatpush1.bf16.msra.mxu0 0
      %1576 = vmatprep.subr.bf16.mxu0 0
      %1577 = vmatpush1.bf16.msra.mxu0 0
      %1578 = vmatprep.subr.bf16.mxu0 0
      %1579 = vmatpush1.bf16.msra.mxu0 0
      %1580 = vmatprep.subr.bf16.mxu0 0
      %1581 = vmatpush1.bf16.msra.mxu0 0
      %1582 = vmatprep.subr.bf16.mxu0 0
      %1583 = vmatpush1.bf16.msra.mxu0 0
      %1584 = vmatprep.subr.bf16.mxu0 0
      %1585 = vmatpush1.bf16.msra.mxu0 0
      %1586 = vmatprep.subr.bf16.mxu0 0
      %1587 = vmatpush1.bf16.msra.mxu0 0
      %1588 = vmatprep.subr.bf16.mxu0 0
      %1589 = vmatpush1.bf16.msra.mxu0 0
      %1590 = vmatprep.subr.bf16.mxu0 0
      %1591 = vmatpush1.bf16.msra.mxu0 0
      %1592 = vmatprep.subr.bf16.mxu0 0
      %1593 = vmatpush1.bf16.msra.mxu0 0
      %1594 = vmatprep.subr.bf16.mxu0 0
      %1595 = vmatpush1.bf16.msra.mxu0 0
      %1596 = vmatprep.subr.bf16.mxu0 0
      %1597 = vmatpush1.bf16.msra.mxu0 0
      %1598 = vmatprep.subr.bf16.mxu0 0
      %1599 = vmatpush1.bf16.msra.mxu0 0
      %1600 = vmatprep.subr.bf16.mxu0 0
      %1601 = vmatpush1.bf16.msra.mxu0 0
      %1602 = vmatprep.mubr.bf16.mxu0 0
      %1603 = vmatmul.mubr.bf16.gmra.mrb[0].mxu0 %v1565
      %v1604 = vpop.f32.mrb[0].mxu0
      %v1605 = vadd.f32 0.0, %v1604
      %v1606 = vpop.f32.mrb[0].mxu0
      %v1607 = vpop.f32.mrb[0].mxu0
      %v1608 = vpop.f32.mrb[0].mxu0
      %1609 = vdwg.mxu0
      %1610 = vrot.lane.b32.xlu0 %v1317, 64
      %v1611 = vpop.permute.xlu0 %1610
      %v1613 = vsel %vm428, %v1559, 0
      %v1616 = vsel %vm674, %v1611, 0
      %1618 = vmatprep.subr.bf16.mxu0 0
      %1619 = vmatpush1.bf16.msra.mxu0 %v1616
      %1620 = vmatprep.subr.bf16.mxu0 0
      %1621 = vmatpush1.bf16.msra.mxu0 0
      %1622 = vmatprep.subr.bf16.mxu0 0
      %1623 = vmatpush1.bf16.msra.mxu0 0
      %1624 = vmatprep.subr.bf16.mxu0 0
      %1625 = vmatpush1.bf16.msra.mxu0 0
      %1626 = vmatprep.subr.bf16.mxu0 0
      %1627 = vmatpush1.bf16.msra.mxu0 0
      %1628 = vmatprep.subr.bf16.mxu0 0
      %1629 = vmatpush1.bf16.msra.mxu0 0
      %1630 = vmatprep.subr.bf16.mxu0 0
      %1631 = vmatpush1.bf16.msra.mxu0 0
      %1632 = vmatprep.subr.bf16.mxu0 0
      %1633 = vmatpush1.bf16.msra.mxu0 0
      %1634 = vmatprep.subr.bf16.mxu0 0
      %1635 = vmatpush1.bf16.msra.mxu0 0
      %1636 = vmatprep.subr.bf16.mxu0 0
      %1637 = vmatpush1.bf16.msra.mxu0 0
      %1638 = vmatprep.subr.bf16.mxu0 0
      %1639 = vmatpush1.bf16.msra.mxu0 0
      %1640 = vmatprep.subr.bf16.mxu0 0
      %1641 = vmatpush1.bf16.msra.mxu0 0
      %1642 = vmatprep.subr.bf16.mxu0 0
      %1643 = vmatpush1.bf16.msra.mxu0 0
      %1644 = vmatprep.subr.bf16.mxu0 0
      %1645 = vmatpush1.bf16.msra.mxu0 0
      %1646 = vmatprep.subr.bf16.mxu0 0
      %1647 = vmatpush1.bf16.msra.mxu0 0
      %1648 = vmatprep.subr.bf16.mxu0 0
      %1649 = vmatpush1.bf16.msra.mxu0 0
      %1650 = vmatprep.mubr.bf16.mxu0 0
      %1651 = vmatmul.mubr.bf16.gmra.mrb[0].mxu0 %v1613
      %v1652 = vpop.f32.mrb[0].mxu0
      %v1653 = vadd.f32 0.0, %v1652
      %v1654 = vpop.f32.mrb[0].mxu0
      %v1655 = vpop.f32.mrb[0].mxu0
      %v1656 = vpop.f32.mrb[0].mxu0
      %1657 = vdwg.mxu0
      %1658 = vrot.lane.b32.xlu0 %v1319, 64
      %v1659 = vpop.permute.xlu0 %1658
      %v1661 = vsel %vm428, %v1560, 0
      %v1664 = vsel %vm674, %v1659, 0
      %1666 = vmatprep.subr.bf16.mxu0 0
      %1667 = vmatpush1.bf16.msra.mxu0 %v1664
      %1668 = vmatprep.subr.bf16.mxu0 0
      %1669 = vmatpush1.bf16.msra.mxu0 0
      %1670 = vmatprep.subr.bf16.mxu0 0
      %1671 = vmatpush1.bf16.msra.mxu0 0
      %1672 = vmatprep.subr.bf16.mxu0 0
      %1673 = vmatpush1.bf16.msra.mxu0 0
      %1674 = vmatprep.subr.bf16.mxu0 0
      %1675 = vmatpush1.bf16.msra.mxu0 0
      %1676 = vmatprep.subr.bf16.mxu0 0
      %1677 = vmatpush1.bf16.msra.mxu0 0
      %1678 = vmatprep.subr.bf16.mxu0 0
      %1679 = vmatpush1.bf16.msra.mxu0 0
      %1680 = vmatprep.subr.bf16.mxu0 0
      %1681 = vmatpush1.bf16.msra.mxu0 0
      %1682 = vmatprep.subr.bf16.mxu0 0
      %1683 = vmatpush1.bf16.msra.mxu0 0
      %1684 = vmatprep.subr.bf16.mxu0 0
      %1685 = vmatpush1.bf16.msra.mxu0 0
      %1686 = vmatprep.subr.bf16.mxu0 0
      %1687 = vmatpush1.bf16.msra.mxu0 0
      %1688 = vmatprep.subr.bf16.mxu0 0
      %1689 = vmatpush1.bf16.msra.mxu0 0
      %1690 = vmatprep.subr.bf16.mxu0 0
      %1691 = vmatpush1.bf16.msra.mxu0 0
      %1692 = vmatprep.subr.bf16.mxu0 0
      %1693 = vmatpush1.bf16.msra.mxu0 0
      %1694 = vmatprep.subr.bf16.mxu0 0
      %1695 = vmatpush1.bf16.msra.mxu0 0
      %1696 = vmatprep.subr.bf16.mxu0 0
      %1697 = vmatpush1.bf16.msra.mxu0 0
      %1698 = vmatprep.mubr.bf16.mxu0 0
      %1699 = vmatmul.mubr.bf16.gmra.mrb[0].mxu0 %v1661
      %v1700 = vpop.f32.mrb[0].mxu0
      %v1701 = vadd.f32 0.0, %v1700
      %v1702 = vpop.f32.mrb[0].mxu0
      %v1703 = vpop.f32.mrb[0].mxu0
      %v1704 = vpop.f32.mrb[0].mxu0
      %1705 = vdwg.mxu0
      %1706 = vrot.lane.b32.xlu0 %v1321, 64
      %v1707 = vpop.permute.xlu0 %1706
      %v1709 = vsel %vm428, %v1561, 0
      %v1712 = vsel %vm674, %v1707, 0
      %1714 = vmatprep.subr.bf16.mxu0 0
      %1715 = vmatpush1.bf16.msra.mxu0 %v1712
      %1716 = vmatprep.subr.bf16.mxu0 0
      %1717 = vmatpush1.bf16.msra.mxu0 0
      %1718 = vmatprep.subr.bf16.mxu0 0
      %1719 = vmatpush1.bf16.msra.mxu0 0
      %1720 = vmatprep.subr.bf16.mxu0 0
      %1721 = vmatpush1.bf16.msra.mxu0 0
      %1722 = vmatprep.subr.bf16.mxu0 0
      %1723 = vmatpush1.bf16.msra.mxu0 0
      %1724 = vmatprep.subr.bf16.mxu0 0
      %1725 = vmatpush1.bf16.msra.mxu0 0
      %1726 = vmatprep.subr.bf16.mxu0 0
      %1727 = vmatpush1.bf16.msra.mxu0 0
      %1728 = vmatprep.subr.bf16.mxu0 0
      %1729 = vmatpush1.bf16.msra.mxu0 0
      %1730 = vmatprep.subr.bf16.mxu0 0
      %1731 = vmatpush1.bf16.msra.mxu0 0
      %1732 = vmatprep.subr.bf16.mxu0 0
      %1733 = vmatpush1.bf16.msra.mxu0 0
      %1734 = vmatprep.subr.bf16.mxu0 0
      %1735 = vmatpush1.bf16.msra.mxu0 0
      %1736 = vmatprep.subr.bf16.mxu0 0
      %1737 = vmatpush1.bf16.msra.mxu0 0
      %1738 = vmatprep.subr.bf16.mxu0 0
      %1739 = vmatpush1.bf16.msra.mxu0 0
      %1740 = vmatprep.subr.bf16.mxu0 0
      %1741 = vmatpush1.bf16.msra.mxu0 0
      %1742 = vmatprep.subr.bf16.mxu0 0
      %1743 = vmatpush1.bf16.msra.mxu0 0
      %1744 = vmatprep.subr.bf16.mxu0 0
      %1745 = vmatpush1.bf16.msra.mxu0 0
      %1746 = vmatprep.mubr.bf16.mxu0 0
      %1747 = vmatmul.mubr.bf16.gmra.mrb[0].mxu0 %v1709
      %v1748 = vpop.f32.mrb[0].mxu0
      %v1749 = vadd.f32 0.0, %v1748
      %v1750 = vpop.f32.mrb[0].mxu0
      %v1751 = vpop.f32.mrb[0].mxu0
      %v1752 = vpop.f32.mrb[0].mxu0
      %1753 = vdwg.mxu0
      %v1754 = vrcp.pop %v1548
      %v1755 = vrcp.pop %v1551
      %v1756 = vrcp.pop %v1554
      %v1757 = vrcp.pop %v1557
      %v1758 = vmul.f32 %v1605, %v1754
      %v1759 = vmul.f32 %v1653, %v1755
      %v1760 = vmul.f32 %v1701, %v1756
      %v1761 = vmul.f32 %v1749, %v1757
      %v1762 = vpack.c.bf16 %v1758, %v1758
      %v1763 = vpack.c.bf16 %v1759, %v1759
      %v1764 = vpack.c.bf16 %v1760, %v1760
      %v1765 = vpack.c.bf16 %v1761, %v1761
      %s1766 = scalar_lea.vmem %s4, 16
      %v1767 = vld [vmem:[%s1766] sm:$0xf]
      %v1768 = vld [vmem:[%s1766 + $0x4] sm:$0xf]
      %v1769 = vld [vmem:[%s1766 + $0x8] sm:$0xf]
      %v1770 = vld [vmem:[%s1766 + $0xc] sm:$0xf]
      %v1772 = vsel %vm428, %v1762, 0
      %v1775 = vsel %vm674, %v1767, 0
      %1777 = vmatprep.subr.bf16.mxu0 0
      %1778 = vmatpush1.bf16.msra.mxu0 %v1775
      %1779 = vmatprep.subr.bf16.mxu0 0
      %1780 = vmatpush1.bf16.msra.mxu0 0
      %1781 = vmatprep.subr.bf16.mxu0 0
      %1782 = vmatpush1.bf16.msra.mxu0 0
      %1783 = vmatprep.subr.bf16.mxu0 0
      %1784 = vmatpush1.bf16.msra.mxu0 0
      %1785 = vmatprep.subr.bf16.mxu0 0
      %1786 = vmatpush1.bf16.msra.mxu0 0
      %1787 = vmatprep.subr.bf16.mxu0 0
      %1788 = vmatpush1.bf16.msra.mxu0 0
      %1789 = vmatprep.subr.bf16.mxu0 0
      %1790 = vmatpush1.bf16.msra.mxu0 0
      %1791 = vmatprep.subr.bf16.mxu0 0
      %1792 = vmatpush1.bf16.msra.mxu0 0
      %1793 = vmatprep.subr.bf16.mxu0 0
      %1794 = vmatpush1.bf16.msra.mxu0 0
      %1795 = vmatprep.subr.bf16.mxu0 0
      %1796 = vmatpush1.bf16.msra.mxu0 0
      %1797 = vmatprep.subr.bf16.mxu0 0
      %1798 = vmatpush1.bf16.msra.mxu0 0
      %1799 = vmatprep.subr.bf16.mxu0 0
      %1800 = vmatpush1.bf16.msra.mxu0 0
      %1801 = vmatprep.subr.bf16.mxu0 0
      %1802 = vmatpush1.bf16.msra.mxu0 0
      %1803 = vmatprep.subr.bf16.mxu0 0
      %1804 = vmatpush1.bf16.msra.mxu0 0
      %1805 = vmatprep.subr.bf16.mxu0 0
      %1806 = vmatpush1.bf16.msra.mxu0 0
      %1807 = vmatprep.subr.bf16.mxu0 0
      %1808 = vmatpush1.bf16.msra.mxu0 0
      %1809 = vmatprep.mubr.bf16.mxu0 0
      %1810 = vmatmul.mubr.bf16.gmra.mrb[0].mxu0 %v1772
      %v1811 = vpop.f32.mrb[0].mxu0
      %v1812 = vadd.f32 0.0, %v1811
      %v1813 = vpop.f32.mrb[0].mxu0
      %v1814 = vpop.f32.mrb[0].mxu0
      %v1815 = vpop.f32.mrb[0].mxu0
      %1816 = vdwg.mxu0
      %v1818 = vsel %vm428, %v1763, 0
      %v1821 = vsel %vm674, %v1768, 0
      %1823 = vmatprep.subr.bf16.mxu0 0
      %1824 = vmatpush1.bf16.msra.mxu0 %v1821
      %1825 = vmatprep.subr.bf16.mxu0 0
      %1826 = vmatpush1.bf16.msra.mxu0 0
      %1827 = vmatprep.subr.bf16.mxu0 0
      %1828 = vmatpush1.bf16.msra.mxu0 0
      %1829 = vmatprep.subr.bf16.mxu0 0
      %1830 = vmatpush1.bf16.msra.mxu0 0
      %1831 = vmatprep.subr.bf16.mxu0 0
      %1832 = vmatpush1.bf16.msra.mxu0 0
      %1833 = vmatprep.subr.bf16.mxu0 0
      %1834 = vmatpush1.bf16.msra.mxu0 0
      %1835 = vmatprep.subr.bf16.mxu0 0
      %1836 = vmatpush1.bf16.msra.mxu0 0
      %1837 = vmatprep.subr.bf16.mxu0 0
      %1838 = vmatpush1.bf16.msra.mxu0 0
      %1839 = vmatprep.subr.bf16.mxu0 0
      %1840 = vmatpush1.bf16.msra.mxu0 0
      %1841 = vmatprep.subr.bf16.mxu0 0
      %1842 = vmatpush1.bf16.msra.mxu0 0
      %1843 = vmatprep.subr.bf16.mxu0 0
      %1844 = vmatpush1.bf16.msra.mxu0 0
      %1845 = vmatprep.subr.bf16.mxu0 0
      %1846 = vmatpush1.bf16.msra.mxu0 0
      %1847 = vmatprep.subr.bf16.mxu0 0
      %1848 = vmatpush1.bf16.msra.mxu0 0
      %1849 = vmatprep.subr.bf16.mxu0 0
      %1850 = vmatpush1.bf16.msra.mxu0 0
      %1851 = vmatprep.subr.bf16.mxu0 0
      %1852 = vmatpush1.bf16.msra.mxu0 0
      %1853 = vmatprep.subr.bf16.mxu0 0
      %1854 = vmatpush1.bf16.msra.mxu0 0
      %1855 = vmatprep.mubr.bf16.mxu0 0
      %1856 = vmatmul.mubr.bf16.gmra.mrb[0].mxu0 %v1818
      %v1857 = vpop.f32.mrb[0].mxu0
      %v1858 = vadd.f32 0.0, %v1857
      %v1859 = vpop.f32.mrb[0].mxu0
      %v1860 = vpop.f32.mrb[0].mxu0
      %v1861 = vpop.f32.mrb[0].mxu0
      %1862 = vdwg.mxu0
      %v1864 = vsel %vm428, %v1764, 0
      %v1867 = vsel %vm674, %v1769, 0
      %1869 = vmatprep.subr.bf16.mxu0 0
      %1870 = vmatpush1.bf16.msra.mxu0 %v1867
      %1871 = vmatprep.subr.bf16.mxu0 0
      %1872 = vmatpush1.bf16.msra.mxu0 0
      %1873 = vmatprep.subr.bf16.mxu0 0
      %1874 = vmatpush1.bf16.msra.mxu0 0
      %1875 = vmatprep.subr.bf16.mxu0 0
      %1876 = vmatpush1.bf16.msra.mxu0 0
      %1877 = vmatprep.subr.bf16.mxu0 0
      %1878 = vmatpush1.bf16.msra.mxu0 0
      %1879 = vmatprep.subr.bf16.mxu0 0
      %1880 = vmatpush1.bf16.msra.mxu0 0
      %1881 = vmatprep.subr.bf16.mxu0 0
      %1882 = vmatpush1.bf16.msra.mxu0 0
      %1883 = vmatprep.subr.bf16.mxu0 0
      %1884 = vmatpush1.bf16.msra.mxu0 0
      %1885 = vmatprep.subr.bf16.mxu0 0
      %1886 = vmatpush1.bf16.msra.mxu0 0
      %1887 = vmatprep.subr.bf16.mxu0 0
      %1888 = vmatpush1.bf16.msra.mxu0 0
      %1889 = vmatprep.subr.bf16.mxu0 0
      %1890 = vmatpush1.bf16.msra.mxu0 0
      %1891 = vmatprep.subr.bf16.mxu0 0
      %1892 = vmatpush1.bf16.msra.mxu0 0
      %1893 = vmatprep.subr.bf16.mxu0 0
      %1894 = vmatpush1.bf16.msra.mxu0 0
      %1895 = vmatprep.subr.bf16.mxu0 0
      %1896 = vmatpush1.bf16.msra.mxu0 0
      %1897 = vmatprep.subr.bf16.mxu0 0
      %1898 = vmatpush1.bf16.msra.mxu0 0
      %1899 = vmatprep.subr.bf16.mxu0 0
      %1900 = vmatpush1.bf16.msra.mxu0 0
      %1901 = vmatprep.mubr.bf16.mxu0 0
      %1902 = vmatmul.mubr.bf16.gmra.mrb[0].mxu0 %v1864
      %v1903 = vpop.f32.mrb[0].mxu0
      %v1904 = vadd.f32 0.0, %v1903
      %v1905 = vpop.f32.mrb[0].mxu0
      %v1906 = vpop.f32.mrb[0].mxu0
      %v1907 = vpop.f32.mrb[0].mxu0
      %1908 = vdwg.mxu0
      %v1910 = vsel %vm428, %v1765, 0
      %v1913 = vsel %vm674, %v1770, 0
      %1915 = vmatprep.subr.bf16.mxu0 0
      %1916 = vmatpush1.bf16.msra.mxu0 %v1913
      %1917 = vmatprep.subr.bf16.mxu0 0
      %1918 = vmatpush1.bf16.msra.mxu0 0
      %1919 = vmatprep.subr.bf16.mxu0 0
      %1920 = vmatpush1.bf16.msra.mxu0 0
      %1921 = vmatprep.subr.bf16.mxu0 0
      %1922 = vmatpush1.bf16.msra.mxu0 0
      %1923 = vmatprep.subr.bf16.mxu0 0
      %1924 = vmatpush1.bf16.msra.mxu0 0
      %1925 = vmatprep.subr.bf16.mxu0 0
      %1926 = vmatpush1.bf16.msra.mxu0 0
      %1927 = vmatprep.subr.bf16.mxu0 0
      %1928 = vmatpush1.bf16.msra.mxu0 0
      %1929 = vmatprep.subr.bf16.mxu0 0
      %1930 = vmatpush1.bf16.msra.mxu0 0
      %1931 = vmatprep.subr.bf16.mxu0 0
      %1932 = vmatpush1.bf16.msra.mxu0 0
      %1933 = vmatprep.subr.bf16.mxu0 0
      %1934 = vmatpush1.bf16.msra.mxu0 0
      %1935 = vmatprep.subr.bf16.mxu0 0
      %1936 = vmatpush1.bf16.msra.mxu0 0
      %1937 = vmatprep.subr.bf16.mxu0 0
      %1938 = vmatpush1.bf16.msra.mxu0 0
      %1939 = vmatprep.subr.bf16.mxu0 0
      %1940 = vmatpush1.bf16.msra.mxu0 0
      %1941 = vmatprep.subr.bf16.mxu0 0
      %1942 = vmatpush1.bf16.msra.mxu0 0
      %1943 = vmatprep.subr.bf16.mxu0 0
      %1944 = vmatpush1.bf16.msra.mxu0 0
      %1945 = vmatprep.subr.bf16.mxu0 0
      %1946 = vmatpush1.bf16.msra.mxu0 0
      %1947 = vmatprep.mubr.bf16.mxu0 0
      %1948 = vmatmul.mubr.bf16.gmra.mrb[0].mxu0 %v1910
      %v1949 = vpop.f32.mrb[0].mxu0
      %v1950 = vadd.f32 0.0, %v1949
      %v1951 = vpop.f32.mrb[0].mxu0
      %v1952 = vpop.f32.mrb[0].mxu0
      %v1953 = vpop.f32.mrb[0].mxu0
      %1954 = vdwg.mxu0
      %v1955 = vsel %vm341, %v1812, 0.0
      %v1956 = vsel %vm341, %v1858, 0.0
      %v1957 = vadd.f32 %v1955, %v1956
      %v1958 = vsel %vm341, %v1904, 0.0
      %v1959 = vadd.f32 %v1957, %v1958
      %v1960 = vsel %vm341, %v1950, 0.0
      %v1961 = vadd.f32 %v1959, %v1960
      %v1962 = vadd.f32 %v1235, %v1961
      %v1963 = vmul.f32 %v1962, %v1962
      %v1964 = vsel %vm341, %v1963, 0.0
      %1965 = vadd.xlane.f32.xlu0 %v1964
      %v1966 = vpop.xlane.xlu0 %1965
      %v1967 = vmul.f32 %v1966, %v345
      %v1968 = vadd.f32 %v1967, 1e-06
      %v1969 = vrsqrt.pop %v1968
      %v1970 = vmul.f32 %v1962, %v1969
      %s1971 = scalar_lea.vmem %s5, 1
      %v1972 = vld [vmem:[%s1971] sm:$0x1]
      %v1974 = vlaneseq
      %v1975 = vshrl.u32 %v1974, 7
      %v1976 = vsub.s32 0, %v1975
      %v1977 = vrot.slane %v1972, %v1976
      %v1979 = vmul.f32 %v1970, %v1977
      %v1980 = vpack.c.bf16 %v1979, %v1979
      %s1981 = scalar_lea.vmem %s6, 16
      %v1982 = vld [vmem:[%s1981] sm:$0xf]
      %v1983 = vld [vmem:[%s1981 + $0x4] sm:$0xf]
      %v1984 = vld [vmem:[%s1981 + $0x8] sm:$0xf]
      %v1985 = vld [vmem:[%s1981 + $0xc] sm:$0xf]
      %v1990 = vunpack.c.l.b16 %v1982
      %v1991 = vunpack.c.l.b16 %v1983
      %v1992 = vunpack.c.l.b16 %v1984
      %v1993 = vunpack.c.l.b16 %v1985
      %v1994 = vpack.c.b16 %v1991, %v1990
      %v1995 = vpack.c.b16 %v1993, %v1992
      %v1999 = vsel %vm341, %v1980, 0
      %2001 = vmatprep.subr.bf16.mxu0 0
      %2002 = vmatpush1.bf16.msra.mxu0 %v1994
      %2003 = vmatprep.subr.bf16.mxu0 0
      %2004 = vmatpush1.bf16.msra.mxu0 %v1995
      %2005 = vmatprep.subr.bf16.mxu0 0
      %2006 = vmatpush1.bf16.msra.mxu0 0
      %2007 = vmatprep.subr.bf16.mxu0 0
      %2008 = vmatpush1.bf16.msra.mxu0 0
      %2009 = vmatprep.subr.bf16.mxu0 0
      %2010 = vmatpush1.bf16.msra.mxu0 0
      %2011 = vmatprep.subr.bf16.mxu0 0
      %2012 = vmatpush1.bf16.msra.mxu0 0
      %2013 = vmatprep.subr.bf16.mxu0 0
      %2014 = vmatpush1.bf16.msra.mxu0 0
      %2015 = vmatprep.subr.bf16.mxu0 0
      %2016 = vmatpush1.bf16.msra.mxu0 0
      %2017 = vmatprep.subr.bf16.mxu0 0
      %2018 = vmatpush1.bf16.msra.mxu0 0
      %2019 = vmatprep.subr.bf16.mxu0 0
      %2020 = vmatpush1.bf16.msra.mxu0 0
      %2021 = vmatprep.subr.bf16.mxu0 0
      %2022 = vmatpush1.bf16.msra.mxu0 0
      %2023 = vmatprep.subr.bf16.mxu0 0
      %2024 = vmatpush1.bf16.msra.mxu0 0
      %2025 = vmatprep.subr.bf16.mxu0 0
      %2026 = vmatpush1.bf16.msra.mxu0 0
      %2027 = vmatprep.subr.bf16.mxu0 0
      %2028 = vmatpush1.bf16.msra.mxu0 0
      %2029 = vmatprep.subr.bf16.mxu0 0
      %2030 = vmatpush1.bf16.msra.mxu0 0
      %2031 = vmatprep.subr.bf16.mxu0 0
      %2032 = vmatpush1.bf16.msra.mxu0 0
      %2033 = vmatprep.mubr.bf16.mxu0 0
      %2034 = vmatmul.mubr.bf16.gmra.mrb[0].mxu0 %v1999
      %v2035 = vpop.f32.mrb[0].mxu0
      %v2036 = vadd.f32 0.0, %v2035
      %v2037 = vpop.f32.mrb[0].mxu0
      %v2038 = vpop.f32.mrb[0].mxu0
      %v2039 = vpop.f32.mrb[0].mxu0
      %2040 = vdwg.mxu0
      %v2041 = vxor.u32 %v2036, 2147483648
      %v2042 = vmul.f32 %v2041, 1.442695
      %v2043 = vpow.pop %v2042
      %v2044 = vadd.f32 %v2043, 1.0
      %v2045 = vrcp.pop %v2044
      %v2046 = vmul.f32 1.0, %v2045
      %v2047 = vmul.f32 %v2036, %v2046
      %2049 = vrot.lane.b32.xlu0 %v2036, 64
      %v2050 = vpop.permute.xlu0 %2049
      %v2052 = vmul.f32 %v2047, %v2050
      %v2053 = vpack.c.bf16 %v2052, %v2052
      %s2054 = scalar_lea.vmem %s7, 32
      %v2055 = vld [vmem:[%s2054] sm:$0xf]
      %v2056 = vld [vmem:[%s2054 + $0x4] sm:$0xf]
      %v2057 = vld [vmem:[%s2054 + $0x8] sm:$0xf]
      %v2058 = vld [vmem:[%s2054 + $0xc] sm:$0xf]
      %v2059 = vld [vmem:[%s2054 + $0x10] sm:$0xf]
      %v2060 = vld [vmem:[%s2054 + $0x14] sm:$0xf]
      %v2061 = vld [vmem:[%s2054 + $0x18] sm:$0xf]
      %v2062 = vld [vmem:[%s2054 + $0x1c] sm:$0xf]
      %v2071 = vunpack.c.l.b16 %v2055
      %v2072 = vunpack.c.l.b16 %v2056
      %v2073 = vunpack.c.l.b16 %v2057
      %v2074 = vunpack.c.l.b16 %v2058
      %v2075 = vunpack.c.l.b16 %v2059
      %v2076 = vunpack.c.l.b16 %v2060
      %v2077 = vunpack.c.l.b16 %v2061
      %v2078 = vunpack.c.l.b16 %v2062
      %v2079 = vpack.c.b16 %v2072, %v2071
      %v2080 = vpack.c.b16 %v2074, %v2073
      %v2081 = vpack.c.b16 %v2076, %v2075
      %v2082 = vpack.c.b16 %v2078, %v2077
      %v2088 = vsel %vm1191, %v2053, 0
      %2090 = vmatprep.subr.bf16.mxu0 0
      %2091 = vmatpush1.bf16.msra.mxu0 %v2079
      %2092 = vmatprep.subr.bf16.mxu0 0
      %2093 = vmatpush1.bf16.msra.mxu0 %v2080
      %2094 = vmatprep.subr.bf16.mxu0 0
      %2095 = vmatpush1.bf16.msra.mxu0 %v2081
      %2096 = vmatprep.subr.bf16.mxu0 0
      %2097 = vmatpush1.bf16.msra.mxu0 %v2082
      %2098 = vmatprep.subr.bf16.mxu0 0
      %2099 = vmatpush1.bf16.msra.mxu0 0
      %2100 = vmatprep.subr.bf16.mxu0 0
      %2101 = vmatpush1.bf16.msra.mxu0 0
      %2102 = vmatprep.subr.bf16.mxu0 0
      %2103 = vmatpush1.bf16.msra.mxu0 0
      %2104 = vmatprep.subr.bf16.mxu0 0
      %2105 = vmatpush1.bf16.msra.mxu0 0
      %2106 = vmatprep.subr.bf16.mxu0 0
      %2107 = vmatpush1.bf16.msra.mxu0 0
      %2108 = vmatprep.subr.bf16.mxu0 0
      %2109 = vmatpush1.bf16.msra.mxu0 0
      %2110 = vmatprep.subr.bf16.mxu0 0
      %2111 = vmatpush1.bf16.msra.mxu0 0
      %2112 = vmatprep.subr.bf16.mxu0 0
      %2113 = vmatpush1.bf16.msra.mxu0 0
      %2114 = vmatprep.subr.bf16.mxu0 0
      %2115 = vmatpush1.bf16.msra.mxu0 0
      %2116 = vmatprep.subr.bf16.mxu0 0
      %2117 = vmatpush1.bf16.msra.mxu0 0
      %2118 = vmatprep.subr.bf16.mxu0 0
      %2119 = vmatpush1.bf16.msra.mxu0 0
      %2120 = vmatprep.subr.bf16.mxu0 0
      %2121 = vmatpush1.bf16.msra.mxu0 0
      %2122 = vmatprep.mubr.bf16.mxu0 0
      %2123 = vmatmul.mubr.bf16.gmra.mrb[0].mxu0 %v2088
      %v2124 = vpop.f32.mrb[0].mxu0
      %v2125 = vadd.f32 0.0, %v2124
      %v2126 = vpop.f32.mrb[0].mxu0
      %v2127 = vpop.f32.mrb[0].mxu0
      %v2128 = vpop.f32.mrb[0].mxu0
      %2129 = vdwg.mxu0
      %v2130 = vadd.f32 %v1962, %v2125
      %s2131 = sld [smem:[#allocation3 + %s27]]
      %v2132 = vstv %s2131
      %vm2133 = vcmp.eq.s32.totalorder %v336, %v2132
      %v2134 = vsel %vm2133, 1, 0
      %vm2135 = vcmp.eq.s32.totalorder %v2134, 1
      %v2136 = vsel %vm2135, %v2130, 0.0
      %v2137 = vsel %vm341, %v2136, 0.0
      %v2138 = vrot.slane %v2137, 4
      %v2139 = vadd.f32 %v2137, %v2138
      %v2140 = vrot.slane %v2139, 2
      %v2141 = vadd.f32 %v2139, %v2140
      %v2142 = vrot.slane %v2141, 1
      %v2143 = vadd.f32 %v2141, %v2142
      %v2144 = vmul.f32 %v2143, %v2143
      %v2145 = vsel %vm341, %v2144, 0.0
      %2146 = vadd.xlane.f32.xlu0 %v2145
      %v2147 = vpop.xlane.xlu0 %2146
      %v2148 = vmul.f32 %v2147, %v345
      %v2149 = vadd.f32 %v2148, 1e-06
      %v2150 = vrsqrt.pop %v2149
      %v2151 = vmul.f32 %v2143, %v2150
      %v2152 = vld [vmem:[%s8] sm:$0x1]
      %v2153 = vmul.f32 %v2151, %v2152
      %v2154 = vld [vmem:[%s9] sm:$0x1]
      %v2155 = vmul.f32 %v2153, %v2154
      %vm2156 = vcmask 253952
      %v2157 = vsel %vm2156, %v2155, 0.0
      %2158 = vadd.xlane.f32.xlu0 %v2157
      %v2159 = vpop.xlane.xlu0 %2158
      %vm2160 = vcmask 0
      %2161 = vst.msk [vmem:[%s332] sm:$0x1] %vm2160, %v2159
      %p2162 = scmp.lt.s32.totalorder %s27, 1
      %s2163 = scalar_select %p2162, %s27, 1
      %s2164 = scalar_lea.vmem %s10, %s2163
      // Predicated region
      $region57: #{gpt_reward_forward_impl.1} parent=55 // pred_check
        %p2165 = pneg %p239
      $region58: #{gpt_reward_forward_impl.1} parent=55 // pred_check_branch
        %2167 = sbr.rel (%p2165) target = $region60
      $region59: #{gpt_reward_forward_impl.1} parent=55 // pred_region
        _
      $region60: #{gpt_reward_forward_impl.1} parent=55 // pred_fallthru
        _
    $region56: #{gpt_reward_forward_impl.1} parent=5 // pred_fallthru
      _
    %p2168 = scmp.le.s32.totalorder 2, %s22
    // Predicated region
    $region61: #{gpt_reward_forward_impl.1} parent=5 // pred_check
      %p2169 = pneg %p2168
    $region62: #{gpt_reward_forward_impl.1} parent=5 // pred_check_branch
      %2171 = sbr.rel (%p2169) target = $region64
    $region63: #{gpt_reward_forward_impl.1} parent=5 // pred_region
      %s2172 = ssub.s32 %s22, 2
      // Predicated region
      $region65: #{gpt_reward_forward_impl.1} parent=63 // pred_check
        %p2173 = pneg %p245
      $region66: #{gpt_reward_forward_impl.1} parent=63 // pred_check_branch
        %2175 = sbr.rel (%p2173) target = $region68
      $region67: #{gpt_reward_forward_impl.1} parent=63 // pred_region
        %p2176 = scmp.lt.s32.totalorder %s28, 1
        %s2177 = scalar_select %p2176, %s28, 1
        %s2178 = scalar_lea.vmem %s10, %s2177
      $region68: #{gpt_reward_forward_impl.1} parent=63 // pred_fallthru
        _
    $region64: #{gpt_reward_forward_impl.1} parent=5 // pred_fallthru
      _
  $region6: #{gpt_reward_forward_impl.1} parent=0 // loop_footer
    %s26 = sadd.s32 1, %s22
  $region7: #{gpt_reward_forward_impl.1} parent=0 // loop_footer_branch
    %21 = sbr.rel target = $region3
  $region8: #{gpt_reward_forward_impl.1} parent=0 // loop_exit
    _

</llo_original>
